<compile_context>
chip_gen: v6e
topology: v6e:2x2x1
jax: 0.10.0
libtpu: 0.0.40
codegen_flags: <defaults>
</compile_context>

<pallas_src>
import jax
import jax.numpy as jnp
from jax.experimental import pallas as pl
from jax.experimental.pallas import tpu as pltpu

OUT_PAD = 128  # lane-dense padded width of the final layer (logical width is 9)


def dqn_kernel(x_ref, w1_ref, b1_ref, w2_ref, b2_ref, w3_ref, b3_ref,
               w4_ref, b4_ref, o_ref):
    # All weights (~2.4 MB f32 / ~1.2 MB bf16) are VMEM-resident across the whole grid;
    # each grid step processes one (TM, 9) batch tile: 4 MXU matmuls + VPU ReLUs,
    # always accumulating in f32.
    cdt = w1_ref.dtype  # compute dtype for MXU operands (f32 or bf16)

    h = x_ref[...].astype(cdt)                                           # (TM, 9)

    h = jnp.dot(h, w1_ref[...], preferred_element_type=jnp.float32) + b1_ref[...]
    h = jnp.maximum(h, 0.0)                                              # (TM, 512) f32

    h = jnp.dot(h.astype(cdt), w2_ref[...],
                preferred_element_type=jnp.float32) + b2_ref[...]
    h = jnp.maximum(h, 0.0)                                              # (TM, 512) f32

    h = jnp.dot(h.astype(cdt), w3_ref[...],
                preferred_element_type=jnp.float32) + b3_ref[...]
    h = jnp.maximum(h, 0.0)                                              # (TM, 512) f32

    out = jnp.dot(h.astype(cdt), w4_ref[...],
                  preferred_element_type=jnp.float32) + b4_ref[...]      # (TM, 128) f32
    o_ref[...] = out.astype(o_ref.dtype)


def _round_up(n, m):
    return ((n + m - 1) // m) * m


def dqn_forward(x, params, *, tm=256, weights_dtype=None):
    """x: (B, 9) float32.  params: dict from init_params.

    tm: batch tile size (rows per grid step).  Bounds activation VMEM to ~tm*512*4*3 bytes
        and lets input/output DMA overlap compute; 256-512 is safe on v5e/v6e/v7x.
    weights_dtype: optionally jnp.bfloat16 to halve weight HBM traffic (f32 accumulate kept).
    """
    B = x.shape[0]
    # Pick a tile that is a multiple of 8 (sublane) and pad the batch to a whole number of
    # tiles so every block is full (no partial-tile edge cases).
    tm = max(8, min(tm, _round_up(B, 8)))
    Bp = _round_up(B, tm)
    if Bp != B:
        x = jnp.pad(x, ((0, Bp - B), (0, 0)))

    def cast_w(w):
        return w.astype(weights_dtype) if weights_dtype is not None else w

    w1, w2, w3 = cast_w(params["w1"]), cast_w(params["w2"]), cast_w(params["w3"])
    b1, b2, b3 = params["b1"], params["b2"], params["b3"]            # biases stay f32
    # Zero-pad the final layer to a lane-dense 128-wide output; sliced back to 9 below.
    w4 = cast_w(jnp.pad(params["w4"], ((0, 0), (0, OUT_PAD - 9))))
    b4 = jnp.pad(params["b4"], ((0, 0), (0, OUT_PAD - 9)))

    grid = (Bp // tm,)
    const = lambda i: (0, 0)    # weights/biases: same block every step -> DMA'd once
    batch = lambda i: (i, 0)    # activations: walk the batch axis

    in_specs = [
        pl.BlockSpec((tm, 9), batch),          # x tile
        pl.BlockSpec(w1.shape, const),
        pl.BlockSpec(b1.shape, const),
        pl.BlockSpec(w2.shape, const),
        pl.BlockSpec(b2.shape, const),
        pl.BlockSpec(w3.shape, const),
        pl.BlockSpec(b3.shape, const),
        pl.BlockSpec(w4.shape, const),
        pl.BlockSpec(b4.shape, const),
    ]
    out_specs = pl.BlockSpec((tm, OUT_PAD), batch)

    out_padded = pl.pallas_call(
        dqn_kernel,
        out_shape=jax.ShapeDtypeStruct((Bp, OUT_PAD), jnp.float32),
        grid=grid,
        in_specs=in_specs,
        out_specs=out_specs,
        compiler_params=pltpu.CompilerParams(
            dimension_semantics=("parallel",),   # shard batch tiles across TCs (v7x)
        ),
    )(x, w1, b1, w2, b2, w3, b3, w4, b4)

    return out_padded[:B, :9]


def init_params(key):
    """Deterministic init mirroring nn.Linear default (U[-1/sqrt(fan_in), +1/sqrt(fan_in)]).
    Weights stored transposed relative to PyTorch: (in_features, out_features)."""
    dims = [(9, 512), (512, 512), (512, 512), (512, 9)]
    params = {}
    for i, (fan_in, fan_out) in enumerate(dims, start=1):
        key, kw, kb = jax.random.split(key, 3)
        bound = 1.0 / jnp.sqrt(jnp.float32(fan_in))
        params[f"w{i}"] = jax.random.uniform(
            kw, (fan_in, fan_out), jnp.float32, -bound, bound)
        # Bias kept 2D (1, fan_out): broadcasts over the batch tile inside the kernel.
        params[f"b{i}"] = jax.random.uniform(
            kb, (1, fan_out), jnp.float32, -bound, bound)
    return params


def dqn_reference(x, params):
    h = x
    for i in range(1, 4):
        h = jnp.maximum(h @ params[f"w{i}"] + params[f"b{i}"], 0.0)
    return h @ params["w4"] + params["b4"]


if __name__ == "__main__":
    key = jax.random.PRNGKey(0)
    key, kx = jax.random.split(key)

    # Small deterministic check (single grid step), exact f32 path.
    batch = 8
    x = jax.random.uniform(kx, (batch, 9), jnp.float32)  # DQN state input: 9 features
    params = init_params(key)

    out = jax.block_until_ready(dqn_forward(x, params))
    ref = dqn_reference(x, params)
    assert out.shape == (batch, 9)
    assert jnp.allclose(out, ref, atol=1e-4, rtol=1e-4)

    # Larger, non-multiple batch: exercises the batch grid + padding + parallel axis.
    key, kx2 = jax.random.split(key)
    x2 = jax.random.uniform(kx2, (300, 9), jnp.float32)
    out2 = jax.block_until_ready(dqn_forward(x2, params, tm=256))
    ref2 = dqn_reference(x2, params)
    assert out2.shape == (300, 9)
    assert jnp.allclose(out2, ref2, atol=1e-4, rtol=1e-4)

    # bf16-weight path (halved weight HBM traffic); deliberately looser tolerance.
    out_bf16 = jax.block_until_ready(
        dqn_forward(x2, params, tm=256, weights_dtype=jnp.bfloat16))
    assert jnp.allclose(out_bf16, ref2, atol=5e-2, rtol=5e-2)

    print("KERNEL_OK")
</pallas_src>

<mosaic_0001>
module attributes {stable_mosaic.version = 11 : i64} {
  func.func @dqn_kernel(%arg0: i32, %arg1: memref<8x9xf32, #tpu.memory_space<vmem>>, %arg2: memref<9x512xf32, #tpu.memory_space<vmem>>, %arg3: memref<1x512xf32, #tpu.memory_space<vmem>>, %arg4: memref<512x512xf32, #tpu.memory_space<vmem>>, %arg5: memref<1x512xf32, #tpu.memory_space<vmem>>, %arg6: memref<512x512xf32, #tpu.memory_space<vmem>>, %arg7: memref<1x512xf32, #tpu.memory_space<vmem>>, %arg8: memref<512x128xf32, #tpu.memory_space<vmem>>, %arg9: memref<1x128xf32, #tpu.memory_space<vmem>>, %arg10: memref<8x128xf32, #tpu.memory_space<vmem>>) attributes {dimension_semantics = [#tpu.dimension_semantics<parallel>], iteration_bounds = array<i64: 1>, scalar_prefetch = 0 : i64, scratch_operands = 0 : i64, tpu.core_type = #tpu.core_type<tc>, window_params = [{transform_indices = @transform_0, window_bounds = array<i64: 8, 9>}, {pipeline_mode = #tpu.pipeline_mode<synchronous>, transform_indices = @transform_1, window_bounds = array<i64: 9, 512>}, {pipeline_mode = #tpu.pipeline_mode<synchronous>, transform_indices = @transform_2, window_bounds = array<i64: 1, 512>}, {pipeline_mode = #tpu.pipeline_mode<synchronous>, transform_indices = @transform_3, window_bounds = array<i64: 512, 512>}, {pipeline_mode = #tpu.pipeline_mode<synchronous>, transform_indices = @transform_4, window_bounds = array<i64: 1, 512>}, {pipeline_mode = #tpu.pipeline_mode<synchronous>, transform_indices = @transform_5, window_bounds = array<i64: 512, 512>}, {pipeline_mode = #tpu.pipeline_mode<synchronous>, transform_indices = @transform_6, window_bounds = array<i64: 1, 512>}, {pipeline_mode = #tpu.pipeline_mode<synchronous>, transform_indices = @transform_7, window_bounds = array<i64: 512, 128>}, {pipeline_mode = #tpu.pipeline_mode<synchronous>, transform_indices = @transform_8, window_bounds = array<i64: 1, 128>}, {transform_indices = @transform_9, window_bounds = array<i64: 8, 128>}]} {
    %c0 = arith.constant 0 : index
    %c0_0 = arith.constant 0 : index
    %0 = vector.load %arg1[%c0, %c0_0] : memref<8x9xf32, #tpu.memory_space<vmem>>, vector<8x9xf32>
    %c0_1 = arith.constant 0 : index
    %c0_2 = arith.constant 0 : index
    %1 = vector.load %arg2[%c0_1, %c0_2] : memref<9x512xf32, #tpu.memory_space<vmem>>, vector<9x512xf32>
    %cst = arith.constant dense<0.000000e+00> : vector<8x512xf32>
    %2 = tpu.matmul %0, %1, %cst {dimension_numbers = #tpu.dot_dimension_numbers<[1], [0], [0], [1], [0, 0, 1, 1], [], []>} : vector<8x9xf32>, vector<9x512xf32>, vector<8x512xf32> -> vector<8x512xf32>
    %c0_3 = arith.constant 0 : index
    %c0_4 = arith.constant 0 : index
    %3 = vector.load %arg3[%c0_3, %c0_4] : memref<1x512xf32, #tpu.memory_space<vmem>>, vector<1x512xf32>
    %4 = vector.broadcast %3 : vector<1x512xf32> to vector<8x512xf32>
    %5 = arith.addf %2, %4 : vector<8x512xf32>
    %cst_5 = arith.constant 0.000000e+00 : f32
    %6 = vector.broadcast %cst_5 : f32 to vector<8x512xf32>
    %7 = arith.maximumf %5, %6 : vector<8x512xf32>
    %c0_6 = arith.constant 0 : index
    %c0_7 = arith.constant 0 : index
    %8 = vector.load %arg4[%c0_6, %c0_7] : memref<512x512xf32, #tpu.memory_space<vmem>>, vector<512x512xf32>
    %cst_8 = arith.constant dense<0.000000e+00> : vector<8x512xf32>
    %9 = tpu.matmul %7, %8, %cst_8 {dimension_numbers = #tpu.dot_dimension_numbers<[1], [0], [0], [1], [0, 0, 1, 1], [], []>} : vector<8x512xf32>, vector<512x512xf32>, vector<8x512xf32> -> vector<8x512xf32>
    %c0_9 = arith.constant 0 : index
    %c0_10 = arith.constant 0 : index
    %10 = vector.load %arg5[%c0_9, %c0_10] : memref<1x512xf32, #tpu.memory_space<vmem>>, vector<1x512xf32>
    %11 = vector.broadcast %10 : vector<1x512xf32> to vector<8x512xf32>
    %12 = arith.addf %9, %11 : vector<8x512xf32>
    %cst_11 = arith.constant 0.000000e+00 : f32
    %13 = vector.broadcast %cst_11 : f32 to vector<8x512xf32>
    %14 = arith.maximumf %12, %13 : vector<8x512xf32>
    %c0_12 = arith.constant 0 : index
    %c0_13 = arith.constant 0 : index
    %15 = vector.load %arg6[%c0_12, %c0_13] : memref<512x512xf32, #tpu.memory_space<vmem>>, vector<512x512xf32>
    %cst_14 = arith.constant dense<0.000000e+00> : vector<8x512xf32>
    %16 = tpu.matmul %14, %15, %cst_14 {dimension_numbers = #tpu.dot_dimension_numbers<[1], [0], [0], [1], [0, 0, 1, 1], [], []>} : vector<8x512xf32>, vector<512x512xf32>, vector<8x512xf32> -> vector<8x512xf32>
    %c0_15 = arith.constant 0 : index
    %c0_16 = arith.constant 0 : index
    %17 = vector.load %arg7[%c0_15, %c0_16] : memref<1x512xf32, #tpu.memory_space<vmem>>, vector<1x512xf32>
    %18 = vector.broadcast %17 : vector<1x512xf32> to vector<8x512xf32>
    %19 = arith.addf %16, %18 : vector<8x512xf32>
    %cst_17 = arith.constant 0.000000e+00 : f32
    %20 = vector.broadcast %cst_17 : f32 to vector<8x512xf32>
    %21 = arith.maximumf %19, %20 : vector<8x512xf32>
    %c0_18 = arith.constant 0 : index
    %c0_19 = arith.constant 0 : index
    %22 = vector.load %arg8[%c0_18, %c0_19] : memref<512x128xf32, #tpu.memory_space<vmem>>, vector<512x128xf32>
    %cst_20 = arith.constant dense<0.000000e+00> : vector<8x128xf32>
    %23 = tpu.matmul %21, %22, %cst_20 {dimension_numbers = #tpu.dot_dimension_numbers<[1], [0], [0], [1], [0, 0, 1, 1], [], []>} : vector<8x512xf32>, vector<512x128xf32>, vector<8x128xf32> -> vector<8x128xf32>
    %c0_21 = arith.constant 0 : index
    %c0_22 = arith.constant 0 : index
    %24 = vector.load %arg9[%c0_21, %c0_22] : memref<1x128xf32, #tpu.memory_space<vmem>>, vector<1x128xf32>
    %25 = vector.broadcast %24 : vector<1x128xf32> to vector<8x128xf32>
    %26 = arith.addf %23, %25 : vector<8x128xf32>
    %c0_23 = arith.constant 0 : index
    %c0_24 = arith.constant 0 : index
    %27 = vector.load %arg10[%c0_23, %c0_24] : memref<8x128xf32, #tpu.memory_space<vmem>>, vector<8x128xf32>
    tpu.vector_store %arg10[%c0_23, %c0_24], %26 {strides = array<i32>} : memref<8x128xf32, #tpu.memory_space<vmem>>, vector<8x128xf32>,
    return
  }
  func.func @transform_0(%arg0: i32) -> (i32, i32) {
    %c0_i32 = arith.constant 0 : i32
    %c0_i32_0 = arith.constant 0 : i32
    return %arg0, %c0_i32 : i32, i32
  }
  func.func @transform_1(%arg0: i32) -> (i32, i32) {
    %c0_i32 = arith.constant 0 : i32
    %c0_i32_0 = arith.constant 0 : i32
    %c0_i32_1 = arith.constant 0 : i32
    return %c0_i32, %c0_i32_0 : i32, i32
  }
  func.func @transform_2(%arg0: i32) -> (i32, i32) {
    %c0_i32 = arith.constant 0 : i32
    %c0_i32_0 = arith.constant 0 : i32
    %c0_i32_1 = arith.constant 0 : i32
    return %c0_i32, %c0_i32_0 : i32, i32
  }
  func.func @transform_3(%arg0: i32) -> (i32, i32) {
    %c0_i32 = arith.constant 0 : i32
    %c0_i32_0 = arith.constant 0 : i32
    %c0_i32_1 = arith.constant 0 : i32
    return %c0_i32, %c0_i32_0 : i32, i32
  }
  func.func @transform_4(%arg0: i32) -> (i32, i32) {
    %c0_i32 = arith.constant 0 : i32
    %c0_i32_0 = arith.constant 0 : i32
    %c0_i32_1 = arith.constant 0 : i32
    return %c0_i32, %c0_i32_0 : i32, i32
  }
  func.func @transform_5(%arg0: i32) -> (i32, i32) {
    %c0_i32 = arith.constant 0 : i32
    %c0_i32_0 = arith.constant 0 : i32
    %c0_i32_1 = arith.constant 0 : i32
    return %c0_i32, %c0_i32_0 : i32, i32
  }
  func.func @transform_6(%arg0: i32) -> (i32, i32) {
    %c0_i32 = arith.constant 0 : i32
    %c0_i32_0 = arith.constant 0 : i32
    %c0_i32_1 = arith.constant 0 : i32
    return %c0_i32, %c0_i32_0 : i32, i32
  }
  func.func @transform_7(%arg0: i32) -> (i32, i32) {
    %c0_i32 = arith.constant 0 : i32
    %c0_i32_0 = arith.constant 0 : i32
    %c0_i32_1 = arith.constant 0 : i32
    return %c0_i32, %c0_i32_0 : i32, i32
  }
  func.func @transform_8(%arg0: i32) -> (i32, i32) {
    %c0_i32 = arith.constant 0 : i32
    %c0_i32_0 = arith.constant 0 : i32
    %c0_i32_1 = arith.constant 0 : i32
    return %c0_i32, %c0_i32_0 : i32, i32
  }
  func.func @transform_9(%arg0: i32) -> (i32, i32) {
    %c0_i32 = arith.constant 0 : i32
    %c0_i32_0 = arith.constant 0 : i32
    return %arg0, %c0_i32 : i32, i32
  }
}

</mosaic_0001>

<llo_original>
// kernel: tpu_custom_call.1
$region0: #{tpu_custom_call.1}
  #allocation0 [shape = 'u32[]', space=smem, size = 0x4, offset = 0x4, fixed_abs, tag = 'smem constant byte address 0x4 - core index']
  #allocation1 [shape = 'u32[144,128]{1,0:T(1,128)}', space=vmem, size = 0x12000, scoped, tag = 'internal scratch']
  %s0 = inlined_call_operand.hbm [shape: f32[8,9], index: 0, kind: input, shape index: {}]
  %s1 = inlined_call_operand.hbm [shape: f32[9,512], index: 1, kind: input, shape index: {}]
  %s2 = inlined_call_operand.hbm [shape: f32[1,512], index: 2, kind: input, shape index: {}]
  %s3 = inlined_call_operand.hbm [shape: f32[512,512], index: 3, kind: input, shape index: {}]
  %s4 = inlined_call_operand.vmem [shape: f32[1,512], index: 4, kind: input, shape index: {}]
  %s5 = inlined_call_operand.hbm [shape: f32[512,512], index: 5, kind: input, shape index: {}]
  %s6 = inlined_call_operand.vmem [shape: f32[1,512], index: 6, kind: input, shape index: {}]
  %s7 = inlined_call_operand.hbm [shape: f32[512,128], index: 7, kind: input, shape index: {}]
  %s8 = inlined_call_operand.vmem [shape: f32[1,128], index: 8, kind: input, shape index: {}]
  %s9 = inlined_call_operand.hbm [shape: f32[8,128], index: 9, kind: output, shape index: {}]
  %s10 = sld [smem:[#allocation0]]
  $region70: #{tpu_custom_call.1} parent=0
    _
  %s12 = ssub.s32 1, %s10
  %s13 = scalar_select 0, %s12, %s10
  $region1: #{tpu_custom_call.1} parent=0
    #allocation2 [shape = 'u8[4096]{0}', space=vmem, size = 0x1000, scoped, tag = 'input window, operand 0, single buffered']
    #allocation3 [shape = 's32[1]{0}', space=sflag, size = 0x4, scoped, tag = 'scoped memory for tpu_custom_call.1']
    #allocation4 [shape = 's32[1]{0}', space=sflag, size = 0x4, scoped, tag = 'scoped memory for tpu_custom_call.1']
    #allocation5 [shape = 'u8[32768]{0}', space=vmem, size = 0x8000, scoped, tag = 'input window, operand 1, single buffered']
    #allocation6 [shape = 's32[1]{0}', space=sflag, size = 0x4, scoped, tag = 'scoped memory for tpu_custom_call.1']
    #allocation7 [shape = 'u8[2048]{0}', space=vmem, size = 0x800, scoped, tag = 'input window, operand 2, single buffered']
    #allocation8 [shape = 'u8[1048576]{0}', space=vmem, size = 0x100000, scoped, tag = 'input window, operand 3, single buffered']
    #allocation9 [shape = 's32[1]{0}', space=sflag, size = 0x4, scoped, tag = 'scoped memory for tpu_custom_call.1']
    #allocation10 [shape = 'u8[1048576]{0}', space=vmem, size = 0x100000, scoped, tag = 'input window, operand 5, single buffered']
    #allocation11 [shape = 'u8[262144]{0}', space=vmem, size = 0x40000, scoped, tag = 'input window, operand 7, single buffered']
    #allocation12 [shape = 's32[1]{0}', space=sflag, size = 0x4, scoped, tag = 'scoped memory for tpu_custom_call.1']
    #allocation13 [shape = 'u8[4096]{0}', space=vmem, size = 0x1000, scoped, tag = 'output window, operand 0, single buffered']
    %14 = vsyncpa [#allocation3], 0
    %15 = vsyncpa [#allocation6], 0
    %16 = vsyncpa [#allocation9], 0
    %17 = vsyncpa [#allocation12], 0
    %18 = vsyncpa [#allocation4], 0
    // Predicated region
    $region2: #{tpu_custom_call.1} parent=1 // pred_check
      _
    $region3: #{tpu_custom_call.1} parent=1 // pred_check_branch
      %20 = sbr.rel (0) target = $region5
    $region4: #{tpu_custom_call.1} parent=1 // pred_region
      %s22 = ssub.s32 128, 128
      %23 = vsyncadd [#allocation3], %s22
      %s25 = sshll.u32 [#allocation2], 4
      %s26 = int_to_ptr.vmem [resolvable:$true] %s25
      %28 = dma.hbm_to_vmem [thread:$0]  %s0, 128, %s26, [#allocation3]
    $region5: #{tpu_custom_call.1} parent=1 // pred_fallthru
      _
    // Predicated region
    $region6: #{tpu_custom_call.1} parent=1 // pred_check
      _
    $region7: #{tpu_custom_call.1} parent=1 // pred_check_branch
      %30 = sbr.rel (0) target = $region9
    $region8: #{tpu_custom_call.1} parent=1 // pred_region
      %s32 = ssub.s32 1024, 1024
      %33 = vsyncadd [#allocation6], %s32
      %s34 = sshll.u32 [#allocation5], 4
      %s35 = int_to_ptr.vmem [resolvable:$true] %s34
      %40 = dma.hbm_to_vmem [thread:$0]  %s1, 1024, %s35, [#allocation6], 512, 512, 32
    $region9: #{tpu_custom_call.1} parent=1 // pred_fallthru
      _
    // Predicated region
    $region10: #{tpu_custom_call.1} parent=1 // pred_check
      _
    $region11: #{tpu_custom_call.1} parent=1 // pred_check_branch
      %42 = sbr.rel (0) target = $region13
    $region12: #{tpu_custom_call.1} parent=1 // pred_region
      %s44 = ssub.s32 64, 64
      %45 = vsyncadd [#allocation6], %s44
      %s47 = sshll.u32 [#allocation7], 4
      %s48 = int_to_ptr.vmem [resolvable:$true] %s47
      %50 = dma.hbm_to_vmem [thread:$0]  %s2, 64, %s48, [#allocation6]
    $region13: #{tpu_custom_call.1} parent=1 // pred_fallthru
      _
    // Predicated region
    $region14: #{tpu_custom_call.1} parent=1 // pred_check
      _
    $region15: #{tpu_custom_call.1} parent=1 // pred_check_branch
      %52 = sbr.rel (0) target = $region17
    $region16: #{tpu_custom_call.1} parent=1 // pred_region
      %s54 = ssub.s32 32768, 32768
      %55 = vsyncadd [#allocation9], %s54
      %s56 = sshll.u32 [#allocation8], 4
      %s57 = int_to_ptr.vmem [resolvable:$true] %s56
      %62 = dma.hbm_to_vmem [thread:$0]  %s3, 32768, %s57, [#allocation9], 512, 512, 32
    $region17: #{tpu_custom_call.1} parent=1 // pred_fallthru
      _
    // Predicated region
    $region18: #{tpu_custom_call.1} parent=1 // pred_check
      _
    $region19: #{tpu_custom_call.1} parent=1 // pred_check_branch
      %64 = sbr.rel (0) target = $region21
    $region20: #{tpu_custom_call.1} parent=1 // pred_region
      _
    $region21: #{tpu_custom_call.1} parent=1 // pred_fallthru
      _
    // Predicated region
    $region22: #{tpu_custom_call.1} parent=1 // pred_check
      _
    $region23: #{tpu_custom_call.1} parent=1 // pred_check_branch
      %66 = sbr.rel (0) target = $region25
    $region24: #{tpu_custom_call.1} parent=1 // pred_region
      %s68 = ssub.s32 32768, 32768
      %69 = vsyncadd [#allocation9], %s68
      %s70 = sshll.u32 [#allocation10], 4
      %s71 = int_to_ptr.vmem [resolvable:$true] %s70
      %76 = dma.hbm_to_vmem [thread:$0]  %s5, 32768, %s71, [#allocation9], 512, 512, 32
    $region25: #{tpu_custom_call.1} parent=1 // pred_fallthru
      _
    // Predicated region
    $region26: #{tpu_custom_call.1} parent=1 // pred_check
      _
    $region27: #{tpu_custom_call.1} parent=1 // pred_check_branch
      %78 = sbr.rel (0) target = $region29
    $region28: #{tpu_custom_call.1} parent=1 // pred_region
      _
    $region29: #{tpu_custom_call.1} parent=1 // pred_fallthru
      _
    // Predicated region
    $region30: #{tpu_custom_call.1} parent=1 // pred_check
      _
    $region31: #{tpu_custom_call.1} parent=1 // pred_check_branch
      %80 = sbr.rel (0) target = $region33
    $region32: #{tpu_custom_call.1} parent=1 // pred_region
      %s82 = ssub.s32 8192, 8192
      %83 = vsyncadd [#allocation12], %s82
      %s84 = sshll.u32 [#allocation11], 4
      %s85 = int_to_ptr.vmem [resolvable:$true] %s84
      %90 = dma.hbm_to_vmem [thread:$0]  %s7, 8192, %s85, [#allocation12], 128, 128, 8
    $region33: #{tpu_custom_call.1} parent=1 // pred_fallthru
      _
    // Predicated region
    $region34: #{tpu_custom_call.1} parent=1 // pred_check
      _
    $region35: #{tpu_custom_call.1} parent=1 // pred_check_branch
      %92 = sbr.rel (0) target = $region37
    $region36: #{tpu_custom_call.1} parent=1 // pred_region
      _
    $region37: #{tpu_custom_call.1} parent=1 // pred_fallthru
      _
    // Predicated region
    $region38: #{tpu_custom_call.1} parent=1 // pred_check
      _
    $region39: #{tpu_custom_call.1} parent=1 // pred_check_branch
      %94 = sbr.rel (0) target = $region41
    $region40: #{tpu_custom_call.1} parent=1 // pred_region
      %95 = dma.done [#allocation3], 128
    $region41: #{tpu_custom_call.1} parent=1 // pred_fallthru
      _
    // Predicated region
    $region42: #{tpu_custom_call.1} parent=1 // pred_check
      _
    $region43: #{tpu_custom_call.1} parent=1 // pred_check_branch
      %97 = sbr.rel (0) target = $region45
    $region44: #{tpu_custom_call.1} parent=1 // pred_region
      %98 = dma.done [#allocation6], 1024
    $region45: #{tpu_custom_call.1} parent=1 // pred_fallthru
      _
    // Predicated region
    $region46: #{tpu_custom_call.1} parent=1 // pred_check
      _
    $region47: #{tpu_custom_call.1} parent=1 // pred_check_branch
      %100 = sbr.rel (0) target = $region49
    $region48: #{tpu_custom_call.1} parent=1 // pred_region
      %101 = dma.done [#allocation6], 64
    $region49: #{tpu_custom_call.1} parent=1 // pred_fallthru
      _
    // Predicated region
    $region50: #{tpu_custom_call.1} parent=1 // pred_check
      _
    $region51: #{tpu_custom_call.1} parent=1 // pred_check_branch
      %103 = sbr.rel (0) target = $region53
    $region52: #{tpu_custom_call.1} parent=1 // pred_region
      %104 = dma.done [#allocation9], 32768
    $region53: #{tpu_custom_call.1} parent=1 // pred_fallthru
      _
    // Predicated region
    $region54: #{tpu_custom_call.1} parent=1 // pred_check
      _
    $region55: #{tpu_custom_call.1} parent=1 // pred_check_branch
      %106 = sbr.rel (0) target = $region57
    $region56: #{tpu_custom_call.1} parent=1 // pred_region
      %107 = dma.done [#allocation9], 32768
    $region57: #{tpu_custom_call.1} parent=1 // pred_fallthru
      _
    // Predicated region
    $region58: #{tpu_custom_call.1} parent=1 // pred_check
      _
    $region59: #{tpu_custom_call.1} parent=1 // pred_check_branch
      %109 = sbr.rel (0) target = $region61
    $region60: #{tpu_custom_call.1} parent=1 // pred_region
      %110 = dma.done [#allocation12], 8192
    $region61: #{tpu_custom_call.1} parent=1 // pred_fallthru
      _
    %v111 = vld [vmem:[#allocation2] sm:$0xff]
    %v112 = vld [vmem:[#allocation5] sm:$0xff]
    %v113 = vld [vmem:[#allocation5 + $0x8] sm:$0xff]
    %v114 = vld [vmem:[#allocation5 + $0x10] sm:$0xff]
    %v115 = vld [vmem:[#allocation5 + $0x18] sm:$0xff]
    %v116 = vld [vmem:[#allocation5 + $0x20] sm:$0x1]
    %v117 = vld [vmem:[#allocation5 + $0x28] sm:$0x1]
    %v118 = vld [vmem:[#allocation5 + $0x30] sm:$0x1]
    %v119 = vld [vmem:[#allocation5 + $0x38] sm:$0x1]
    %v120 = vld [vmem:[#allocation7] sm:$0xf]
    %v122 = vlaneseq
    %v123 = vshrl.u32 %v122, 7
    %v124 = vsub.s32 0, %v123
    %v125 = vrot.slane %v120, %v124
    %v126 = vlaneseq
    %v127 = vshrl.u32 %v126, 7
    %v128 = vsub.s32 1, %v127
    %v129 = vrot.slane %v120, %v128
    %v130 = vlaneseq
    %v131 = vshrl.u32 %v130, 7
    %v132 = vsub.s32 2, %v131
    %v133 = vrot.slane %v120, %v132
    %v134 = vlaneseq
    %v135 = vshrl.u32 %v134, 7
    %v136 = vsub.s32 3, %v135
    %v137 = vrot.slane %v120, %v136
    %vm142 = vcmask 72704
    %v144 = vsel %vm142, %v111, 0
    %vm146 = vcmask 1040384
    %v148 = vsel %vm146, %v116, 0
    %v151 = vsel %vm146, %v117, 0
    %v154 = vsel %vm146, %v118, 0
    %v157 = vsel %vm146, %v119, 0
    %159 = vmatprep.subr.mxu0 0.0
    %160 = vmatpush1.msra.mxu0 0.0
    %161 = vmatprep.subr.mxu0 0.0
    %162 = vmatpush1.msra.mxu0 0.0
    %163 = vmatprep.subr.mxu0 0.0
    %164 = vmatpush1.msra.mxu0 0.0
    %165 = vmatprep.subr.mxu0 0.0
    %166 = vmatpush1.msra.mxu0 0.0
    %167 = vmatprep.subr.mxu0 0.0
    %168 = vmatpush1.msra.mxu0 0.0
    %169 = vmatprep.subr.mxu0 0.0
    %170 = vmatpush1.msra.mxu0 0.0
    %171 = vmatprep.subr.mxu0 0.0
    %172 = vmatpush1.msra.mxu0 0.0
    %173 = vmatprep.subr.mxu0 0.0
    %174 = vmatpush1.msra.mxu0 0.0
    %175 = vmatprep.subr.mxu0 0.0
    %176 = vmatpush1.msra.mxu0 0.0
    %177 = vmatprep.subr.mxu0 0.0
    %178 = vmatpush1.msra.mxu0 0.0
    %179 = vmatprep.subr.mxu0 0.0
    %180 = vmatpush1.msra.mxu0 0.0
    %181 = vmatprep.subr.mxu0 0.0
    %182 = vmatpush1.msra.mxu0 0.0
    %183 = vmatprep.subr.mxu0 0.0
    %184 = vmatpush1.msra.mxu0 0.0
    %185 = vmatprep.subr.mxu0 0.0
    %186 = vmatpush1.msra.mxu0 0.0
    %187 = vmatprep.subr.mxu0 %v151
    %188 = vmatpush1.msra.mxu0 %v148
    %189 = vmatprep.subr.mxu0 %v113
    %190 = vmatpush1.msra.mxu0 %v112
    %191 = vmatprep.subr.mxu0 0.0
    %192 = vmatpush2.msra.mxu0 0.0
    %193 = vmatprep.subr.mxu0 0.0
    %194 = vmatpush2.msra.mxu0 0.0
    %195 = vmatprep.subr.mxu0 0.0
    %196 = vmatpush2.msra.mxu0 0.0
    %197 = vmatprep.subr.mxu0 0.0
    %198 = vmatpush2.msra.mxu0 0.0
    %199 = vmatprep.subr.mxu0 0.0
    %200 = vmatpush2.msra.mxu0 0.0
    %201 = vmatprep.subr.mxu0 0.0
    %202 = vmatpush2.msra.mxu0 0.0
    %203 = vmatprep.subr.mxu0 0.0
    %204 = vmatpush2.msra.mxu0 0.0
    %205 = vmatprep.subr.mxu0 0.0
    %206 = vmatpush2.msra.mxu0 0.0
    %207 = vmatprep.subr.mxu0 0.0
    %208 = vmatpush2.msra.mxu0 0.0
    %209 = vmatprep.subr.mxu0 0.0
    %210 = vmatpush2.msra.mxu0 0.0
    %211 = vmatprep.subr.mxu0 0.0
    %212 = vmatpush2.msra.mxu0 0.0
    %213 = vmatprep.subr.mxu0 0.0
    %214 = vmatpush2.msra.mxu0 0.0
    %215 = vmatprep.subr.mxu0 0.0
    %216 = vmatpush2.msra.mxu0 0.0
    %217 = vmatprep.subr.mxu0 0.0
    %218 = vmatpush2.msra.mxu0 0.0
    %219 = vmatprep.subr.mxu0 0.0
    %220 = vmatpush2.msra.mxu0 0.0
    %221 = vmatprep.subr.mxu0 0.0
    %222 = vmatpush2.msra.mxu0 0.0
    %223 = vmatprep.mubr.f32.mxu0 0.0
    %224 = vmatmul.mubr.f32.gmra.mxu0 %v144
    %v225 = vpop.f32.mrf.mxu0
    %v226 = vadd.f32 %v125, %v225
    %v227 = vpop.f32.mrf.mxu0
    %v228 = vadd.f32 %v129, %v227
    %229 = vdwg.mxu0
    %230 = vmatprep.subr.mxu0 0.0
    %231 = vmatpush1.msra.mxu0 0.0
    %232 = vmatprep.subr.mxu0 0.0
    %233 = vmatpush1.msra.mxu0 0.0
    %234 = vmatprep.subr.mxu0 0.0
    %235 = vmatpush1.msra.mxu0 0.0
    %236 = vmatprep.subr.mxu0 0.0
    %237 = vmatpush1.msra.mxu0 0.0
    %238 = vmatprep.subr.mxu0 0.0
    %239 = vmatpush1.msra.mxu0 0.0
    %240 = vmatprep.subr.mxu0 0.0
    %241 = vmatpush1.msra.mxu0 0.0
    %242 = vmatprep.subr.mxu0 0.0
    %243 = vmatpush1.msra.mxu0 0.0
    %244 = vmatprep.subr.mxu0 0.0
    %245 = vmatpush1.msra.mxu0 0.0
    %246 = vmatprep.subr.mxu0 0.0
    %247 = vmatpush1.msra.mxu0 0.0
    %248 = vmatprep.subr.mxu0 0.0
    %249 = vmatpush1.msra.mxu0 0.0
    %250 = vmatprep.subr.mxu0 0.0
    %251 = vmatpush1.msra.mxu0 0.0
    %252 = vmatprep.subr.mxu0 0.0
    %253 = vmatpush1.msra.mxu0 0.0
    %254 = vmatprep.subr.mxu0 0.0
    %255 = vmatpush1.msra.mxu0 0.0
    %256 = vmatprep.subr.mxu0 0.0
    %257 = vmatpush1.msra.mxu0 0.0
    %258 = vmatprep.subr.mxu0 %v157
    %259 = vmatpush1.msra.mxu0 %v154
    %260 = vmatprep.subr.mxu0 %v115
    %261 = vmatpush1.msra.mxu0 %v114
    %262 = vmatprep.subr.mxu0 0.0
    %263 = vmatpush2.msra.mxu0 0.0
    %264 = vmatprep.subr.mxu0 0.0
    %265 = vmatpush2.msra.mxu0 0.0
    %266 = vmatprep.subr.mxu0 0.0
    %267 = vmatpush2.msra.mxu0 0.0
    %268 = vmatprep.subr.mxu0 0.0
    %269 = vmatpush2.msra.mxu0 0.0
    %270 = vmatprep.subr.mxu0 0.0
    %271 = vmatpush2.msra.mxu0 0.0
    %272 = vmatprep.subr.mxu0 0.0
    %273 = vmatpush2.msra.mxu0 0.0
    %274 = vmatprep.subr.mxu0 0.0
    %275 = vmatpush2.msra.mxu0 0.0
    %276 = vmatprep.subr.mxu0 0.0
    %277 = vmatpush2.msra.mxu0 0.0
    %278 = vmatprep.subr.mxu0 0.0
    %279 = vmatpush2.msra.mxu0 0.0
    %280 = vmatprep.subr.mxu0 0.0
    %281 = vmatpush2.msra.mxu0 0.0
    %282 = vmatprep.subr.mxu0 0.0
    %283 = vmatpush2.msra.mxu0 0.0
    %284 = vmatprep.subr.mxu0 0.0
    %285 = vmatpush2.msra.mxu0 0.0
    %286 = vmatprep.subr.mxu0 0.0
    %287 = vmatpush2.msra.mxu0 0.0
    %288 = vmatprep.subr.mxu0 0.0
    %289 = vmatpush2.msra.mxu0 0.0
    %290 = vmatprep.subr.mxu0 0.0
    %291 = vmatpush2.msra.mxu0 0.0
    %292 = vmatprep.subr.mxu0 0.0
    %293 = vmatpush2.msra.mxu0 0.0
    %294 = vmatprep.mubr.f32.mxu0 0.0
    %295 = vmatmul.mubr.f32.gmra.mxu0 %v144
    %v296 = vpop.f32.mrf.mxu0
    %v297 = vadd.f32 %v133, %v296
    %v298 = vpop.f32.mrf.mxu0
    %v299 = vadd.f32 %v137, %v298
    %300 = vdwg.mxu0
    %v301 = vmax.f32 %v226, 0.0
    %v302 = vmax.f32 %v228, 0.0
    %v303 = vmax.f32 %v297, 0.0
    %v304 = vmax.f32 %v299, 0.0
    %v305 = vld [vmem:[#allocation8] sm:$0xff]
    %v306 = vld [vmem:[#allocation8 + $0x8] sm:$0xff]
    %v307 = vld [vmem:[#allocation8 + $0x10] sm:$0xff]
    %v308 = vld [vmem:[#allocation8 + $0x18] sm:$0xff]
    %v309 = vld [vmem:[#allocation8 + $0x20] sm:$0xff]
    %v310 = vld [vmem:[#allocation8 + $0x28] sm:$0xff]
    %v311 = vld [vmem:[#allocation8 + $0x30] sm:$0xff]
    %v312 = vld [vmem:[#allocation8 + $0x38] sm:$0xff]
    %v313 = vld [vmem:[#allocation8 + $0x40] sm:$0xff]
    %v314 = vld [vmem:[#allocation8 + $0x48] sm:$0xff]
    %v315 = vld [vmem:[#allocation8 + $0x50] sm:$0xff]
    %v316 = vld [vmem:[#allocation8 + $0x58] sm:$0xff]
    %v317 = vld [vmem:[#allocation8 + $0x60] sm:$0xff]
    %v318 = vld [vmem:[#allocation8 + $0x68] sm:$0xff]
    %v319 = vld [vmem:[#allocation8 + $0x70] sm:$0xff]
    %v320 = vld [vmem:[#allocation8 + $0x78] sm:$0xff]
    %v321 = vld [vmem:[#allocation8 + $0x80] sm:$0xff]
    %v322 = vld [vmem:[#allocation8 + $0x88] sm:$0xff]
    %v323 = vld [vmem:[#allocation8 + $0x90] sm:$0xff]
    %v324 = vld [vmem:[#allocation8 + $0x98] sm:$0xff]
    %v325 = vld [vmem:[#allocation8 + $0xa0] sm:$0xff]
    %v326 = vld [vmem:[#allocation8 + $0xa8] sm:$0xff]
    %v327 = vld [vmem:[#allocation8 + $0xb0] sm:$0xff]
    %v328 = vld [vmem:[#allocation8 + $0xb8] sm:$0xff]
    %v329 = vld [vmem:[#allocation8 + $0xc0] sm:$0xff]
    %v330 = vld [vmem:[#allocation8 + $0xc8] sm:$0xff]
    %v331 = vld [vmem:[#allocation8 + $0xd0] sm:$0xff]
    %v332 = vld [vmem:[#allocation8 + $0xd8] sm:$0xff]
    %v333 = vld [vmem:[#allocation8 + $0xe0] sm:$0xff]
    %v334 = vld [vmem:[#allocation8 + $0xe8] sm:$0xff]
    %v335 = vld [vmem:[#allocation8 + $0xf0] sm:$0xff]
    %v336 = vld [vmem:[#allocation8 + $0xf8] sm:$0xff]
    %v337 = vld [vmem:[#allocation8 + $0x100] sm:$0xff]
    %v338 = vld [vmem:[#allocation8 + $0x108] sm:$0xff]
    %v339 = vld [vmem:[#allocation8 + $0x110] sm:$0xff]
    %v340 = vld [vmem:[#allocation8 + $0x118] sm:$0xff]
    %v341 = vld [vmem:[#allocation8 + $0x120] sm:$0xff]
    %v342 = vld [vmem:[#allocation8 + $0x128] sm:$0xff]
    %v343 = vld [vmem:[#allocation8 + $0x130] sm:$0xff]
    %v344 = vld [vmem:[#allocation8 + $0x138] sm:$0xff]
    %v345 = vld [vmem:[#allocation8 + $0x140] sm:$0xff]
    %v346 = vld [vmem:[#allocation8 + $0x148] sm:$0xff]
    %v347 = vld [vmem:[#allocation8 + $0x150] sm:$0xff]
    %v348 = vld [vmem:[#allocation8 + $0x158] sm:$0xff]
    %v349 = vld [vmem:[#allocation8 + $0x160] sm:$0xff]
    %v350 = vld [vmem:[#allocation8 + $0x168] sm:$0xff]
    %v351 = vld [vmem:[#allocation8 + $0x170] sm:$0xff]
    %v352 = vld [vmem:[#allocation8 + $0x178] sm:$0xff]
    %v353 = vld [vmem:[#allocation8 + $0x180] sm:$0xff]
    %v354 = vld [vmem:[#allocation8 + $0x188] sm:$0xff]
    %v355 = vld [vmem:[#allocation8 + $0x190] sm:$0xff]
    %v356 = vld [vmem:[#allocation8 + $0x198] sm:$0xff]
    %v357 = vld [vmem:[#allocation8 + $0x1a0] sm:$0xff]
    %v358 = vld [vmem:[#allocation8 + $0x1a8] sm:$0xff]
    %v359 = vld [vmem:[#allocation8 + $0x1b0] sm:$0xff]
    %v360 = vld [vmem:[#allocation8 + $0x1b8] sm:$0xff]
    %v361 = vld [vmem:[#allocation8 + $0x1c0] sm:$0xff]
    %v362 = vld [vmem:[#allocation8 + $0x1c8] sm:$0xff]
    %v363 = vld [vmem:[#allocation8 + $0x1d0] sm:$0xff]
    %v364 = vld [vmem:[#allocation8 + $0x1d8] sm:$0xff]
    %v365 = vld [vmem:[#allocation8 + $0x1e0] sm:$0xff]
    %v366 = vld [vmem:[#allocation8 + $0x1e8] sm:$0xff]
    %v367 = vld [vmem:[#allocation8 + $0x1f0] sm:$0xff]
    %v368 = vld [vmem:[#allocation8 + $0x1f8] sm:$0xff]
    %v369 = vld [vmem:[#allocation8 + $0x200] sm:$0xff]
    %v370 = vld [vmem:[#allocation8 + $0x208] sm:$0xff]
    %v371 = vld [vmem:[#allocation8 + $0x210] sm:$0xff]
    %v372 = vld [vmem:[#allocation8 + $0x218] sm:$0xff]
    %v373 = vld [vmem:[#allocation8 + $0x220] sm:$0xff]
    %v374 = vld [vmem:[#allocation8 + $0x228] sm:$0xff]
    %v375 = vld [vmem:[#allocation8 + $0x230] sm:$0xff]
    %v376 = vld [vmem:[#allocation8 + $0x238] sm:$0xff]
    %v377 = vld [vmem:[#allocation8 + $0x240] sm:$0xff]
    %v378 = vld [vmem:[#allocation8 + $0x248] sm:$0xff]
    %v379 = vld [vmem:[#allocation8 + $0x250] sm:$0xff]
    %v380 = vld [vmem:[#allocation8 + $0x258] sm:$0xff]
    %v381 = vld [vmem:[#allocation8 + $0x260] sm:$0xff]
    %v382 = vld [vmem:[#allocation8 + $0x268] sm:$0xff]
    %v383 = vld [vmem:[#allocation8 + $0x270] sm:$0xff]
    %v384 = vld [vmem:[#allocation8 + $0x278] sm:$0xff]
    %v385 = vld [vmem:[#allocation8 + $0x280] sm:$0xff]
    %v386 = vld [vmem:[#allocation8 + $0x288] sm:$0xff]
    %v387 = vld [vmem:[#allocation8 + $0x290] sm:$0xff]
    %v388 = vld [vmem:[#allocation8 + $0x298] sm:$0xff]
    %v389 = vld [vmem:[#allocation8 + $0x2a0] sm:$0xff]
    %v390 = vld [vmem:[#allocation8 + $0x2a8] sm:$0xff]
    %v391 = vld [vmem:[#allocation8 + $0x2b0] sm:$0xff]
    %v392 = vld [vmem:[#allocation8 + $0x2b8] sm:$0xff]
    %v393 = vld [vmem:[#allocation8 + $0x2c0] sm:$0xff]
    %v394 = vld [vmem:[#allocation8 + $0x2c8] sm:$0xff]
    %v395 = vld [vmem:[#allocation8 + $0x2d0] sm:$0xff]
    %v396 = vld [vmem:[#allocation8 + $0x2d8] sm:$0xff]
    %v397 = vld [vmem:[#allocation8 + $0x2e0] sm:$0xff]
    %v398 = vld [vmem:[#allocation8 + $0x2e8] sm:$0xff]
    %v399 = vld [vmem:[#allocation8 + $0x2f0] sm:$0xff]
    %v400 = vld [vmem:[#allocation8 + $0x2f8] sm:$0xff]
    %v401 = vld [vmem:[#allocation8 + $0x300] sm:$0xff]
    %v402 = vld [vmem:[#allocation8 + $0x308] sm:$0xff]
    %v403 = vld [vmem:[#allocation8 + $0x310] sm:$0xff]
    %v404 = vld [vmem:[#allocation8 + $0x318] sm:$0xff]
    %v405 = vld [vmem:[#allocation8 + $0x320] sm:$0xff]
    %v406 = vld [vmem:[#allocation8 + $0x328] sm:$0xff]
    %v407 = vld [vmem:[#allocation8 + $0x330] sm:$0xff]
    %v408 = vld [vmem:[#allocation8 + $0x338] sm:$0xff]
    %v409 = vld [vmem:[#allocation8 + $0x340] sm:$0xff]
    %v410 = vld [vmem:[#allocation8 + $0x348] sm:$0xff]
    %v411 = vld [vmem:[#allocation8 + $0x350] sm:$0xff]
    %v412 = vld [vmem:[#allocation8 + $0x358] sm:$0xff]
    %v413 = vld [vmem:[#allocation8 + $0x360] sm:$0xff]
    %v414 = vld [vmem:[#allocation8 + $0x368] sm:$0xff]
    %v415 = vld [vmem:[#allocation8 + $0x370] sm:$0xff]
    %v416 = vld [vmem:[#allocation8 + $0x378] sm:$0xff]
    %v417 = vld [vmem:[#allocation8 + $0x380] sm:$0xff]
    %v418 = vld [vmem:[#allocation8 + $0x388] sm:$0xff]
    %v419 = vld [vmem:[#allocation8 + $0x390] sm:$0xff]
    %v420 = vld [vmem:[#allocation8 + $0x398] sm:$0xff]
    %v421 = vld [vmem:[#allocation8 + $0x3a0] sm:$0xff]
    %v422 = vld [vmem:[#allocation8 + $0x3a8] sm:$0xff]
    %v423 = vld [vmem:[#allocation8 + $0x3b0] sm:$0xff]
    %v424 = vld [vmem:[#allocation8 + $0x3b8] sm:$0xff]
    %v425 = vld [vmem:[#allocation8 + $0x3c0] sm:$0xff]
    %v426 = vld [vmem:[#allocation8 + $0x3c8] sm:$0xff]
    %v427 = vld [vmem:[#allocation8 + $0x3d0] sm:$0xff]
    %v428 = vld [vmem:[#allocation8 + $0x3d8] sm:$0xff]
    %v429 = vld [vmem:[#allocation8 + $0x3e0] sm:$0xff]
    %v430 = vld [vmem:[#allocation8 + $0x3e8] sm:$0xff]
    %v431 = vld [vmem:[#allocation8 + $0x3f0] sm:$0xff]
    %v432 = vld [vmem:[#allocation8 + $0x3f8] sm:$0xff]
    %v433 = vld [vmem:[#allocation8 + $0x400] sm:$0xff]
    %v434 = vld [vmem:[#allocation8 + $0x408] sm:$0xff]
    %v435 = vld [vmem:[#allocation8 + $0x410] sm:$0xff]
    %v436 = vld [vmem:[#allocation8 + $0x418] sm:$0xff]
    %v437 = vld [vmem:[#allocation8 + $0x420] sm:$0xff]
    %v438 = vld [vmem:[#allocation8 + $0x428] sm:$0xff]
    %v439 = vld [vmem:[#allocation8 + $0x430] sm:$0xff]
    %v440 = vld [vmem:[#allocation8 + $0x438] sm:$0xff]
    %v441 = vld [vmem:[#allocation8 + $0x440] sm:$0xff]
    %v442 = vld [vmem:[#allocation8 + $0x448] sm:$0xff]
    %v443 = vld [vmem:[#allocation8 + $0x450] sm:$0xff]
    %v444 = vld [vmem:[#allocation8 + $0x458] sm:$0xff]
    %v445 = vld [vmem:[#allocation8 + $0x460] sm:$0xff]
    %v446 = vld [vmem:[#allocation8 + $0x468] sm:$0xff]
    %v447 = vld [vmem:[#allocation8 + $0x470] sm:$0xff]
    %v448 = vld [vmem:[#allocation8 + $0x478] sm:$0xff]
    %v449 = vld [vmem:[#allocation8 + $0x480] sm:$0xff]
    %v450 = vld [vmem:[#allocation8 + $0x488] sm:$0xff]
    %v451 = vld [vmem:[#allocation8 + $0x490] sm:$0xff]
    %v452 = vld [vmem:[#allocation8 + $0x498] sm:$0xff]
    %v453 = vld [vmem:[#allocation8 + $0x4a0] sm:$0xff]
    %v454 = vld [vmem:[#allocation8 + $0x4a8] sm:$0xff]
    %v455 = vld [vmem:[#allocation8 + $0x4b0] sm:$0xff]
    %v456 = vld [vmem:[#allocation8 + $0x4b8] sm:$0xff]
    %v457 = vld [vmem:[#allocation8 + $0x4c0] sm:$0xff]
    %v458 = vld [vmem:[#allocation8 + $0x4c8] sm:$0xff]
    %v459 = vld [vmem:[#allocation8 + $0x4d0] sm:$0xff]
    %v460 = vld [vmem:[#allocation8 + $0x4d8] sm:$0xff]
    %v461 = vld [vmem:[#allocation8 + $0x4e0] sm:$0xff]
    %v462 = vld [vmem:[#allocation8 + $0x4e8] sm:$0xff]
    %v463 = vld [vmem:[#allocation8 + $0x4f0] sm:$0xff]
    %v464 = vld [vmem:[#allocation8 + $0x4f8] sm:$0xff]
    %v465 = vld [vmem:[#allocation8 + $0x500] sm:$0xff]
    %v466 = vld [vmem:[#allocation8 + $0x508] sm:$0xff]
    %v467 = vld [vmem:[#allocation8 + $0x510] sm:$0xff]
    %v468 = vld [vmem:[#allocation8 + $0x518] sm:$0xff]
    %v469 = vld [vmem:[#allocation8 + $0x520] sm:$0xff]
    %v470 = vld [vmem:[#allocation8 + $0x528] sm:$0xff]
    %v471 = vld [vmem:[#allocation8 + $0x530] sm:$0xff]
    %v472 = vld [vmem:[#allocation8 + $0x538] sm:$0xff]
    %v473 = vld [vmem:[#allocation8 + $0x540] sm:$0xff]
    %v474 = vld [vmem:[#allocation8 + $0x548] sm:$0xff]
    %v475 = vld [vmem:[#allocation8 + $0x550] sm:$0xff]
    %v476 = vld [vmem:[#allocation8 + $0x558] sm:$0xff]
    %v477 = vld [vmem:[#allocation8 + $0x560] sm:$0xff]
    %v478 = vld [vmem:[#allocation8 + $0x568] sm:$0xff]
    %v479 = vld [vmem:[#allocation8 + $0x570] sm:$0xff]
    %v480 = vld [vmem:[#allocation8 + $0x578] sm:$0xff]
    %v481 = vld [vmem:[#allocation8 + $0x580] sm:$0xff]
    %v482 = vld [vmem:[#allocation8 + $0x588] sm:$0xff]
    %v483 = vld [vmem:[#allocation8 + $0x590] sm:$0xff]
    %v484 = vld [vmem:[#allocation8 + $0x598] sm:$0xff]
    %v485 = vld [vmem:[#allocation8 + $0x5a0] sm:$0xff]
    %v486 = vld [vmem:[#allocation8 + $0x5a8] sm:$0xff]
    %v487 = vld [vmem:[#allocation8 + $0x5b0] sm:$0xff]
    %v488 = vld [vmem:[#allocation8 + $0x5b8] sm:$0xff]
    %v489 = vld [vmem:[#allocation8 + $0x5c0] sm:$0xff]
    %v490 = vld [vmem:[#allocation8 + $0x5c8] sm:$0xff]
    %v491 = vld [vmem:[#allocation8 + $0x5d0] sm:$0xff]
    %v492 = vld [vmem:[#allocation8 + $0x5d8] sm:$0xff]
    %v493 = vld [vmem:[#allocation8 + $0x5e0] sm:$0xff]
    %v494 = vld [vmem:[#allocation8 + $0x5e8] sm:$0xff]
    %v495 = vld [vmem:[#allocation8 + $0x5f0] sm:$0xff]
    %v496 = vld [vmem:[#allocation8 + $0x5f8] sm:$0xff]
    %v497 = vld [vmem:[#allocation8 + $0x600] sm:$0xff]
    %v498 = vld [vmem:[#allocation8 + $0x608] sm:$0xff]
    %v499 = vld [vmem:[#allocation8 + $0x610] sm:$0xff]
    %v500 = vld [vmem:[#allocation8 + $0x618] sm:$0xff]
    %v501 = vld [vmem:[#allocation8 + $0x620] sm:$0xff]
    %v502 = vld [vmem:[#allocation8 + $0x628] sm:$0xff]
    %v503 = vld [vmem:[#allocation8 + $0x630] sm:$0xff]
    %v504 = vld [vmem:[#allocation8 + $0x638] sm:$0xff]
    %v505 = vld [vmem:[#allocation8 + $0x640] sm:$0xff]
    %v506 = vld [vmem:[#allocation8 + $0x648] sm:$0xff]
    %v507 = vld [vmem:[#allocation8 + $0x650] sm:$0xff]
    %v508 = vld [vmem:[#allocation8 + $0x658] sm:$0xff]
    %v509 = vld [vmem:[#allocation8 + $0x660] sm:$0xff]
    %v510 = vld [vmem:[#allocation8 + $0x668] sm:$0xff]
    %v511 = vld [vmem:[#allocation8 + $0x670] sm:$0xff]
    %v512 = vld [vmem:[#allocation8 + $0x678] sm:$0xff]
    %v513 = vld [vmem:[#allocation8 + $0x680] sm:$0xff]
    %v514 = vld [vmem:[#allocation8 + $0x688] sm:$0xff]
    %v515 = vld [vmem:[#allocation8 + $0x690] sm:$0xff]
    %v516 = vld [vmem:[#allocation8 + $0x698] sm:$0xff]
    %v517 = vld [vmem:[#allocation8 + $0x6a0] sm:$0xff]
    %v518 = vld [vmem:[#allocation8 + $0x6a8] sm:$0xff]
    %v519 = vld [vmem:[#allocation8 + $0x6b0] sm:$0xff]
    %v520 = vld [vmem:[#allocation8 + $0x6b8] sm:$0xff]
    %v521 = vld [vmem:[#allocation8 + $0x6c0] sm:$0xff]
    %v522 = vld [vmem:[#allocation8 + $0x6c8] sm:$0xff]
    %v523 = vld [vmem:[#allocation8 + $0x6d0] sm:$0xff]
    %v524 = vld [vmem:[#allocation8 + $0x6d8] sm:$0xff]
    %v525 = vld [vmem:[#allocation8 + $0x6e0] sm:$0xff]
    %v526 = vld [vmem:[#allocation8 + $0x6e8] sm:$0xff]
    %v527 = vld [vmem:[#allocation8 + $0x6f0] sm:$0xff]
    %v528 = vld [vmem:[#allocation8 + $0x6f8] sm:$0xff]
    %v529 = vld [vmem:[#allocation8 + $0x700] sm:$0xff]
    %v530 = vld [vmem:[#allocation8 + $0x708] sm:$0xff]
    %v531 = vld [vmem:[#allocation8 + $0x710] sm:$0xff]
    %v532 = vld [vmem:[#allocation8 + $0x718] sm:$0xff]
    %v533 = vld [vmem:[#allocation8 + $0x720] sm:$0xff]
    %v534 = vld [vmem:[#allocation8 + $0x728] sm:$0xff]
    %v535 = vld [vmem:[#allocation8 + $0x730] sm:$0xff]
    %v536 = vld [vmem:[#allocation8 + $0x738] sm:$0xff]
    %v537 = vld [vmem:[#allocation8 + $0x740] sm:$0xff]
    %v538 = vld [vmem:[#allocation8 + $0x748] sm:$0xff]
    %v539 = vld [vmem:[#allocation8 + $0x750] sm:$0xff]
    %v540 = vld [vmem:[#allocation8 + $0x758] sm:$0xff]
    %v541 = vld [vmem:[#allocation8 + $0x760] sm:$0xff]
    %v542 = vld [vmem:[#allocation8 + $0x768] sm:$0xff]
    %v543 = vld [vmem:[#allocation8 + $0x770] sm:$0xff]
    %v544 = vld [vmem:[#allocation8 + $0x778] sm:$0xff]
    %v545 = vld [vmem:[#allocation8 + $0x780] sm:$0xff]
    %v546 = vld [vmem:[#allocation8 + $0x788] sm:$0xff]
    %v547 = vld [vmem:[#allocation8 + $0x790] sm:$0xff]
    %v548 = vld [vmem:[#allocation8 + $0x798] sm:$0xff]
    %v549 = vld [vmem:[#allocation8 + $0x7a0] sm:$0xff]
    %v550 = vld [vmem:[#allocation8 + $0x7a8] sm:$0xff]
    %v551 = vld [vmem:[#allocation8 + $0x7b0] sm:$0xff]
    %v552 = vld [vmem:[#allocation8 + $0x7b8] sm:$0xff]
    %v553 = vld [vmem:[#allocation8 + $0x7c0] sm:$0xff]
    %v554 = vld [vmem:[#allocation8 + $0x7c8] sm:$0xff]
    %v555 = vld [vmem:[#allocation8 + $0x7d0] sm:$0xff]
    %v556 = vld [vmem:[#allocation8 + $0x7d8] sm:$0xff]
    %v557 = vld [vmem:[#allocation8 + $0x7e0] sm:$0xff]
    %v558 = vld [vmem:[#allocation8 + $0x7e8] sm:$0xff]
    %v559 = vld [vmem:[#allocation8 + $0x7f0] sm:$0xff]
    %v560 = vld [vmem:[#allocation8 + $0x7f8] sm:$0xff]
    %v561 = vld [vmem:[%s4] sm:$0xf]
    %v563 = vlaneseq
    %v564 = vshrl.u32 %v563, 7
    %v565 = vsub.s32 0, %v564
    %v566 = vrot.slane %v561, %v565
    %v567 = vlaneseq
    %v568 = vshrl.u32 %v567, 7
    %v569 = vsub.s32 1, %v568
    %v570 = vrot.slane %v561, %v569
    %v571 = vlaneseq
    %v572 = vshrl.u32 %v571, 7
    %v573 = vsub.s32 2, %v572
    %v574 = vrot.slane %v561, %v573
    %v575 = vlaneseq
    %v576 = vshrl.u32 %v575, 7
    %v577 = vsub.s32 3, %v576
    %v578 = vrot.slane %v561, %v577
    %583 = vmatprep.subr.mxu0 %v366
    %584 = vmatpush1.msra.mxu0 %v365
    %585 = vmatprep.subr.mxu0 %v362
    %586 = vmatpush1.msra.mxu0 %v361
    %587 = vmatprep.subr.mxu0 %v358
    %588 = vmatpush1.msra.mxu0 %v357
    %589 = vmatprep.subr.mxu0 %v354
    %590 = vmatpush1.msra.mxu0 %v353
    %591 = vmatprep.subr.mxu0 %v350
    %592 = vmatpush1.msra.mxu0 %v349
    %593 = vmatprep.subr.mxu0 %v346
    %594 = vmatpush1.msra.mxu0 %v345
    %595 = vmatprep.subr.mxu0 %v342
    %596 = vmatpush1.msra.mxu0 %v341
    %597 = vmatprep.subr.mxu0 %v338
    %598 = vmatpush1.msra.mxu0 %v337
    %599 = vmatprep.subr.mxu0 %v334
    %600 = vmatpush1.msra.mxu0 %v333
    %601 = vmatprep.subr.mxu0 %v330
    %602 = vmatpush1.msra.mxu0 %v329
    %603 = vmatprep.subr.mxu0 %v326
    %604 = vmatpush1.msra.mxu0 %v325
    %605 = vmatprep.subr.mxu0 %v322
    %606 = vmatpush1.msra.mxu0 %v321
    %607 = vmatprep.subr.mxu0 %v318
    %608 = vmatpush1.msra.mxu0 %v317
    %609 = vmatprep.subr.mxu0 %v314
    %610 = vmatpush1.msra.mxu0 %v313
    %611 = vmatprep.subr.mxu0 %v310
    %612 = vmatpush1.msra.mxu0 %v309
    %613 = vmatprep.subr.mxu0 %v306
    %614 = vmatpush1.msra.mxu0 %v305
    %615 = vmatprep.subr.mxu0 %v430
    %616 = vmatpush2.msra.mxu0 %v429
    %617 = vmatprep.subr.mxu0 %v426
    %618 = vmatpush2.msra.mxu0 %v425
    %619 = vmatprep.subr.mxu0 %v422
    %620 = vmatpush2.msra.mxu0 %v421
    %621 = vmatprep.subr.mxu0 %v418
    %622 = vmatpush2.msra.mxu0 %v417
    %623 = vmatprep.subr.mxu0 %v414
    %624 = vmatpush2.msra.mxu0 %v413
    %625 = vmatprep.subr.mxu0 %v410
    %626 = vmatpush2.msra.mxu0 %v409
    %627 = vmatprep.subr.mxu0 %v406
    %628 = vmatpush2.msra.mxu0 %v405
    %629 = vmatprep.subr.mxu0 %v402
    %630 = vmatpush2.msra.mxu0 %v401
    %631 = vmatprep.subr.mxu0 %v398
    %632 = vmatpush2.msra.mxu0 %v397
    %633 = vmatprep.subr.mxu0 %v394
    %634 = vmatpush2.msra.mxu0 %v393
    %635 = vmatprep.subr.mxu0 %v390
    %636 = vmatpush2.msra.mxu0 %v389
    %637 = vmatprep.subr.mxu0 %v386
    %638 = vmatpush2.msra.mxu0 %v385
    %639 = vmatprep.subr.mxu0 %v382
    %640 = vmatpush2.msra.mxu0 %v381
    %641 = vmatprep.subr.mxu0 %v378
    %642 = vmatpush2.msra.mxu0 %v377
    %643 = vmatprep.subr.mxu0 %v374
    %644 = vmatpush2.msra.mxu0 %v373
    %645 = vmatprep.subr.mxu0 %v370
    %646 = vmatpush2.msra.mxu0 %v369
    %647 = vmatprep.mubr.f32.mxu0 %v302
    %648 = vmatmul.mubr.f32.gmra.mxu0 %v301
    %v649 = vpop.f32.mrf.mxu0
    %v650 = vadd.f32 %v566, %v649
    %v651 = vpop.f32.mrf.mxu0
    %v652 = vadd.f32 %v570, %v651
    %653 = vdwg.mxu0
    %654 = vmatprep.subr.mxu0 %v494
    %655 = vmatpush1.msra.mxu0 %v493
    %656 = vmatprep.subr.mxu0 %v490
    %657 = vmatpush1.msra.mxu0 %v489
    %658 = vmatprep.subr.mxu0 %v486
    %659 = vmatpush1.msra.mxu0 %v485
    %660 = vmatprep.subr.mxu0 %v482
    %661 = vmatpush1.msra.mxu0 %v481
    %662 = vmatprep.subr.mxu0 %v478
    %663 = vmatpush1.msra.mxu0 %v477
    %664 = vmatprep.subr.mxu0 %v474
    %665 = vmatpush1.msra.mxu0 %v473
    %666 = vmatprep.subr.mxu0 %v470
    %667 = vmatpush1.msra.mxu0 %v469
    %668 = vmatprep.subr.mxu0 %v466
    %669 = vmatpush1.msra.mxu0 %v465
    %670 = vmatprep.subr.mxu0 %v462
    %671 = vmatpush1.msra.mxu0 %v461
    %672 = vmatprep.subr.mxu0 %v458
    %673 = vmatpush1.msra.mxu0 %v457
    %674 = vmatprep.subr.mxu0 %v454
    %675 = vmatpush1.msra.mxu0 %v453
    %676 = vmatprep.subr.mxu0 %v450
    %677 = vmatpush1.msra.mxu0 %v449
    %678 = vmatprep.subr.mxu0 %v446
    %679 = vmatpush1.msra.mxu0 %v445
    %680 = vmatprep.subr.mxu0 %v442
    %681 = vmatpush1.msra.mxu0 %v441
    %682 = vmatprep.subr.mxu0 %v438
    %683 = vmatpush1.msra.mxu0 %v437
    %684 = vmatprep.subr.mxu0 %v434
    %685 = vmatpush1.msra.mxu0 %v433
    %686 = vmatprep.subr.mxu0 %v558
    %687 = vmatpush2.msra.mxu0 %v557
    %688 = vmatprep.subr.mxu0 %v554
    %689 = vmatpush2.msra.mxu0 %v553
    %690 = vmatprep.subr.mxu0 %v550
    %691 = vmatpush2.msra.mxu0 %v549
    %692 = vmatprep.subr.mxu0 %v546
    %693 = vmatpush2.msra.mxu0 %v545
    %694 = vmatprep.subr.mxu0 %v542
    %695 = vmatpush2.msra.mxu0 %v541
    %696 = vmatprep.subr.mxu0 %v538
    %697 = vmatpush2.msra.mxu0 %v537
    %698 = vmatprep.subr.mxu0 %v534
    %699 = vmatpush2.msra.mxu0 %v533
    %700 = vmatprep.subr.mxu0 %v530
    %701 = vmatpush2.msra.mxu0 %v529
    %702 = vmatprep.subr.mxu0 %v526
    %703 = vmatpush2.msra.mxu0 %v525
    %704 = vmatprep.subr.mxu0 %v522
    %705 = vmatpush2.msra.mxu0 %v521
    %706 = vmatprep.subr.mxu0 %v518
    %707 = vmatpush2.msra.mxu0 %v517
    %708 = vmatprep.subr.mxu0 %v514
    %709 = vmatpush2.msra.mxu0 %v513
    %710 = vmatprep.subr.mxu0 %v510
    %711 = vmatpush2.msra.mxu0 %v509
    %712 = vmatprep.subr.mxu0 %v506
    %713 = vmatpush2.msra.mxu0 %v505
    %714 = vmatprep.subr.mxu0 %v502
    %715 = vmatpush2.msra.mxu0 %v501
    %716 = vmatprep.subr.mxu0 %v498
    %717 = vmatpush2.msra.mxu0 %v497
    %718 = vmatprep.mubr.f32.mxu0 %v304
    %719 = vmatmul.mubr.f32.gmra.mxu0 %v303
    %v720 = vpop.f32.mrf.mxu0
    %v721 = vadd.f32 %v650, %v720
    %v722 = vpop.f32.mrf.mxu0
    %v723 = vadd.f32 %v652, %v722
    %724 = vdwg.mxu0
    %725 = vmatprep.subr.mxu0 %v368
    %726 = vmatpush1.msra.mxu0 %v367
    %727 = vmatprep.subr.mxu0 %v364
    %728 = vmatpush1.msra.mxu0 %v363
    %729 = vmatprep.subr.mxu0 %v360
    %730 = vmatpush1.msra.mxu0 %v359
    %731 = vmatprep.subr.mxu0 %v356
    %732 = vmatpush1.msra.mxu0 %v355
    %733 = vmatprep.subr.mxu0 %v352
    %734 = vmatpush1.msra.mxu0 %v351
    %735 = vmatprep.subr.mxu0 %v348
    %736 = vmatpush1.msra.mxu0 %v347
    %737 = vmatprep.subr.mxu0 %v344
    %738 = vmatpush1.msra.mxu0 %v343
    %739 = vmatprep.subr.mxu0 %v340
    %740 = vmatpush1.msra.mxu0 %v339
    %741 = vmatprep.subr.mxu0 %v336
    %742 = vmatpush1.msra.mxu0 %v335
    %743 = vmatprep.subr.mxu0 %v332
    %744 = vmatpush1.msra.mxu0 %v331
    %745 = vmatprep.subr.mxu0 %v328
    %746 = vmatpush1.msra.mxu0 %v327
    %747 = vmatprep.subr.mxu0 %v324
    %748 = vmatpush1.msra.mxu0 %v323
    %749 = vmatprep.subr.mxu0 %v320
    %750 = vmatpush1.msra.mxu0 %v319
    %751 = vmatprep.subr.mxu0 %v316
    %752 = vmatpush1.msra.mxu0 %v315
    %753 = vmatprep.subr.mxu0 %v312
    %754 = vmatpush1.msra.mxu0 %v311
    %755 = vmatprep.subr.mxu0 %v308
    %756 = vmatpush1.msra.mxu0 %v307
    %757 = vmatprep.subr.mxu0 %v432
    %758 = vmatpush2.msra.mxu0 %v431
    %759 = vmatprep.subr.mxu0 %v428
    %760 = vmatpush2.msra.mxu0 %v427
    %761 = vmatprep.subr.mxu0 %v424
    %762 = vmatpush2.msra.mxu0 %v423
    %763 = vmatprep.subr.mxu0 %v420
    %764 = vmatpush2.msra.mxu0 %v419
    %765 = vmatprep.subr.mxu0 %v416
    %766 = vmatpush2.msra.mxu0 %v415
    %767 = vmatprep.subr.mxu0 %v412
    %768 = vmatpush2.msra.mxu0 %v411
    %769 = vmatprep.subr.mxu0 %v408
    %770 = vmatpush2.msra.mxu0 %v407
    %771 = vmatprep.subr.mxu0 %v404
    %772 = vmatpush2.msra.mxu0 %v403
    %773 = vmatprep.subr.mxu0 %v400
    %774 = vmatpush2.msra.mxu0 %v399
    %775 = vmatprep.subr.mxu0 %v396
    %776 = vmatpush2.msra.mxu0 %v395
    %777 = vmatprep.subr.mxu0 %v392
    %778 = vmatpush2.msra.mxu0 %v391
    %779 = vmatprep.subr.mxu0 %v388
    %780 = vmatpush2.msra.mxu0 %v387
    %781 = vmatprep.subr.mxu0 %v384
    %782 = vmatpush2.msra.mxu0 %v383
    %783 = vmatprep.subr.mxu0 %v380
    %784 = vmatpush2.msra.mxu0 %v379
    %785 = vmatprep.subr.mxu0 %v376
    %786 = vmatpush2.msra.mxu0 %v375
    %787 = vmatprep.subr.mxu0 %v372
    %788 = vmatpush2.msra.mxu0 %v371
    %789 = vmatprep.mubr.f32.mxu0 %v302
    %790 = vmatmul.mubr.f32.gmra.mxu0 %v301
    %v791 = vpop.f32.mrf.mxu0
    %v792 = vadd.f32 %v574, %v791
    %v793 = vpop.f32.mrf.mxu0
    %v794 = vadd.f32 %v578, %v793
    %795 = vdwg.mxu0
    %796 = vmatprep.subr.mxu0 %v496
    %797 = vmatpush1.msra.mxu0 %v495
    %798 = vmatprep.subr.mxu0 %v492
    %799 = vmatpush1.msra.mxu0 %v491
    %800 = vmatprep.subr.mxu0 %v488
    %801 = vmatpush1.msra.mxu0 %v487
    %802 = vmatprep.subr.mxu0 %v484
    %803 = vmatpush1.msra.mxu0 %v483
    %804 = vmatprep.subr.mxu0 %v480
    %805 = vmatpush1.msra.mxu0 %v479
    %806 = vmatprep.subr.mxu0 %v476
    %807 = vmatpush1.msra.mxu0 %v475
    %808 = vmatprep.subr.mxu0 %v472
    %809 = vmatpush1.msra.mxu0 %v471
    %810 = vmatprep.subr.mxu0 %v468
    %811 = vmatpush1.msra.mxu0 %v467
    %812 = vmatprep.subr.mxu0 %v464
    %813 = vmatpush1.msra.mxu0 %v463
    %814 = vmatprep.subr.mxu0 %v460
    %815 = vmatpush1.msra.mxu0 %v459
    %816 = vmatprep.subr.mxu0 %v456
    %817 = vmatpush1.msra.mxu0 %v455
    %818 = vmatprep.subr.mxu0 %v452
    %819 = vmatpush1.msra.mxu0 %v451
    %820 = vmatprep.subr.mxu0 %v448
    %821 = vmatpush1.msra.mxu0 %v447
    %822 = vmatprep.subr.mxu0 %v444
    %823 = vmatpush1.msra.mxu0 %v443
    %824 = vmatprep.subr.mxu0 %v440
    %825 = vmatpush1.msra.mxu0 %v439
    %826 = vmatprep.subr.mxu0 %v436
    %827 = vmatpush1.msra.mxu0 %v435
    %828 = vmatprep.subr.mxu0 %v560
    %829 = vmatpush2.msra.mxu0 %v559
    %830 = vmatprep.subr.mxu0 %v556
    %831 = vmatpush2.msra.mxu0 %v555
    %832 = vmatprep.subr.mxu0 %v552
    %833 = vmatpush2.msra.mxu0 %v551
    %834 = vmatprep.subr.mxu0 %v548
    %835 = vmatpush2.msra.mxu0 %v547
    %836 = vmatprep.subr.mxu0 %v544
    %837 = vmatpush2.msra.mxu0 %v543
    %838 = vmatprep.subr.mxu0 %v540
    %839 = vmatpush2.msra.mxu0 %v539
    %840 = vmatprep.subr.mxu0 %v536
    %841 = vmatpush2.msra.mxu0 %v535
    %842 = vmatprep.subr.mxu0 %v532
    %843 = vmatpush2.msra.mxu0 %v531
    %844 = vmatprep.subr.mxu0 %v528
    %845 = vmatpush2.msra.mxu0 %v527
    %846 = vmatprep.subr.mxu0 %v524
    %847 = vmatpush2.msra.mxu0 %v523
    %848 = vmatprep.subr.mxu0 %v520
    %849 = vmatpush2.msra.mxu0 %v519
    %850 = vmatprep.subr.mxu0 %v516
    %851 = vmatpush2.msra.mxu0 %v515
    %852 = vmatprep.subr.mxu0 %v512
    %853 = vmatpush2.msra.mxu0 %v511
    %854 = vmatprep.subr.mxu0 %v508
    %855 = vmatpush2.msra.mxu0 %v507
    %856 = vmatprep.subr.mxu0 %v504
    %857 = vmatpush2.msra.mxu0 %v503
    %858 = vmatprep.subr.mxu0 %v500
    %859 = vmatpush2.msra.mxu0 %v499
    %860 = vmatprep.mubr.f32.mxu0 %v304
    %861 = vmatmul.mubr.f32.gmra.mxu0 %v303
    %v862 = vpop.f32.mrf.mxu0
    %v863 = vadd.f32 %v792, %v862
    %v864 = vpop.f32.mrf.mxu0
    %v865 = vadd.f32 %v794, %v864
    %866 = vdwg.mxu0
    %v867 = vmax.f32 %v721, 0.0
    %v868 = vmax.f32 %v723, 0.0
    %v869 = vmax.f32 %v863, 0.0
    %v870 = vmax.f32 %v865, 0.0
    %v871 = vld [vmem:[#allocation10] sm:$0xff]
    %v872 = vld [vmem:[#allocation10 + $0x8] sm:$0xff]
    %v873 = vld [vmem:[#allocation10 + $0x10] sm:$0xff]
    %v874 = vld [vmem:[#allocation10 + $0x18] sm:$0xff]
    %v875 = vld [vmem:[#allocation10 + $0x20] sm:$0xff]
    %v876 = vld [vmem:[#allocation10 + $0x28] sm:$0xff]
    %v877 = vld [vmem:[#allocation10 + $0x30] sm:$0xff]
    %v878 = vld [vmem:[#allocation10 + $0x38] sm:$0xff]
    %v879 = vld [vmem:[#allocation10 + $0x40] sm:$0xff]
    %v880 = vld [vmem:[#allocation10 + $0x48] sm:$0xff]
    %v881 = vld [vmem:[#allocation10 + $0x50] sm:$0xff]
    %v882 = vld [vmem:[#allocation10 + $0x58] sm:$0xff]
    %v883 = vld [vmem:[#allocation10 + $0x60] sm:$0xff]
    %v884 = vld [vmem:[#allocation10 + $0x68] sm:$0xff]
    %v885 = vld [vmem:[#allocation10 + $0x70] sm:$0xff]
    %v886 = vld [vmem:[#allocation10 + $0x78] sm:$0xff]
    %v887 = vld [vmem:[#allocation10 + $0x80] sm:$0xff]
    %v888 = vld [vmem:[#allocation10 + $0x88] sm:$0xff]
    %v889 = vld [vmem:[#allocation10 + $0x90] sm:$0xff]
    %v890 = vld [vmem:[#allocation10 + $0x98] sm:$0xff]
    %v891 = vld [vmem:[#allocation10 + $0xa0] sm:$0xff]
    %v892 = vld [vmem:[#allocation10 + $0xa8] sm:$0xff]
    %v893 = vld [vmem:[#allocation10 + $0xb0] sm:$0xff]
    %v894 = vld [vmem:[#allocation10 + $0xb8] sm:$0xff]
    %v895 = vld [vmem:[#allocation10 + $0xc0] sm:$0xff]
    %v896 = vld [vmem:[#allocation10 + $0xc8] sm:$0xff]
    %v897 = vld [vmem:[#allocation10 + $0xd0] sm:$0xff]
    %v898 = vld [vmem:[#allocation10 + $0xd8] sm:$0xff]
    %v899 = vld [vmem:[#allocation10 + $0xe0] sm:$0xff]
    %v900 = vld [vmem:[#allocation10 + $0xe8] sm:$0xff]
    %v901 = vld [vmem:[#allocation10 + $0xf0] sm:$0xff]
    %v902 = vld [vmem:[#allocation10 + $0xf8] sm:$0xff]
    %v903 = vld [vmem:[#allocation10 + $0x100] sm:$0xff]
    %v904 = vld [vmem:[#allocation10 + $0x108] sm:$0xff]
    %v905 = vld [vmem:[#allocation10 + $0x110] sm:$0xff]
    %v906 = vld [vmem:[#allocation10 + $0x118] sm:$0xff]
    %v907 = vld [vmem:[#allocation10 + $0x120] sm:$0xff]
    %v908 = vld [vmem:[#allocation10 + $0x128] sm:$0xff]
    %v909 = vld [vmem:[#allocation10 + $0x130] sm:$0xff]
    %v910 = vld [vmem:[#allocation10 + $0x138] sm:$0xff]
    %v911 = vld [vmem:[#allocation10 + $0x140] sm:$0xff]
    %v912 = vld [vmem:[#allocation10 + $0x148] sm:$0xff]
    %v913 = vld [vmem:[#allocation10 + $0x150] sm:$0xff]
    %v914 = vld [vmem:[#allocation10 + $0x158] sm:$0xff]
    %v915 = vld [vmem:[#allocation10 + $0x160] sm:$0xff]
    %v916 = vld [vmem:[#allocation10 + $0x168] sm:$0xff]
    %v917 = vld [vmem:[#allocation10 + $0x170] sm:$0xff]
    %v918 = vld [vmem:[#allocation10 + $0x178] sm:$0xff]
    %v919 = vld [vmem:[#allocation10 + $0x180] sm:$0xff]
    %v920 = vld [vmem:[#allocation10 + $0x188] sm:$0xff]
    %v921 = vld [vmem:[#allocation10 + $0x190] sm:$0xff]
    %v922 = vld [vmem:[#allocation10 + $0x198] sm:$0xff]
    %v923 = vld [vmem:[#allocation10 + $0x1a0] sm:$0xff]
    %v924 = vld [vmem:[#allocation10 + $0x1a8] sm:$0xff]
    %v925 = vld [vmem:[#allocation10 + $0x1b0] sm:$0xff]
    %v926 = vld [vmem:[#allocation10 + $0x1b8] sm:$0xff]
    %v927 = vld [vmem:[#allocation10 + $0x1c0] sm:$0xff]
    %v928 = vld [vmem:[#allocation10 + $0x1c8] sm:$0xff]
    %v929 = vld [vmem:[#allocation10 + $0x1d0] sm:$0xff]
    %v930 = vld [vmem:[#allocation10 + $0x1d8] sm:$0xff]
    %v931 = vld [vmem:[#allocation10 + $0x1e0] sm:$0xff]
    %v932 = vld [vmem:[#allocation10 + $0x1e8] sm:$0xff]
    %v933 = vld [vmem:[#allocation10 + $0x1f0] sm:$0xff]
    %v934 = vld [vmem:[#allocation10 + $0x1f8] sm:$0xff]
    %v935 = vld [vmem:[#allocation10 + $0x200] sm:$0xff]
    %v936 = vld [vmem:[#allocation10 + $0x208] sm:$0xff]
    %v937 = vld [vmem:[#allocation10 + $0x210] sm:$0xff]
    %v938 = vld [vmem:[#allocation10 + $0x218] sm:$0xff]
    %v939 = vld [vmem:[#allocation10 + $0x220] sm:$0xff]
    %v940 = vld [vmem:[#allocation10 + $0x228] sm:$0xff]
    %v941 = vld [vmem:[#allocation10 + $0x230] sm:$0xff]
    %v942 = vld [vmem:[#allocation10 + $0x238] sm:$0xff]
    %v943 = vld [vmem:[#allocation10 + $0x240] sm:$0xff]
    %v944 = vld [vmem:[#allocation10 + $0x248] sm:$0xff]
    %v945 = vld [vmem:[#allocation10 + $0x250] sm:$0xff]
    %v946 = vld [vmem:[#allocation10 + $0x258] sm:$0xff]
    %v947 = vld [vmem:[#allocation10 + $0x260] sm:$0xff]
    %v948 = vld [vmem:[#allocation10 + $0x268] sm:$0xff]
    %v949 = vld [vmem:[#allocation10 + $0x270] sm:$0xff]
    %v950 = vld [vmem:[#allocation10 + $0x278] sm:$0xff]
    %v951 = vld [vmem:[#allocation10 + $0x280] sm:$0xff]
    %v952 = vld [vmem:[#allocation10 + $0x288] sm:$0xff]
    %v953 = vld [vmem:[#allocation10 + $0x290] sm:$0xff]
    %v954 = vld [vmem:[#allocation10 + $0x298] sm:$0xff]
    %v955 = vld [vmem:[#allocation10 + $0x2a0] sm:$0xff]
    %v956 = vld [vmem:[#allocation10 + $0x2a8] sm:$0xff]
    %v957 = vld [vmem:[#allocation10 + $0x2b0] sm:$0xff]
    %v958 = vld [vmem:[#allocation10 + $0x2b8] sm:$0xff]
    %v959 = vld [vmem:[#allocation10 + $0x2c0] sm:$0xff]
    %v960 = vld [vmem:[#allocation10 + $0x2c8] sm:$0xff]
    %v961 = vld [vmem:[#allocation10 + $0x2d0] sm:$0xff]
    %v962 = vld [vmem:[#allocation10 + $0x2d8] sm:$0xff]
    %v963 = vld [vmem:[#allocation10 + $0x2e0] sm:$0xff]
    %v964 = vld [vmem:[#allocation10 + $0x2e8] sm:$0xff]
    %v965 = vld [vmem:[#allocation10 + $0x2f0] sm:$0xff]
    %v966 = vld [vmem:[#allocation10 + $0x2f8] sm:$0xff]
    %v967 = vld [vmem:[#allocation10 + $0x300] sm:$0xff]
    %v968 = vld [vmem:[#allocation10 + $0x308] sm:$0xff]
    %v969 = vld [vmem:[#allocation10 + $0x310] sm:$0xff]
    %v970 = vld [vmem:[#allocation10 + $0x318] sm:$0xff]
    %v971 = vld [vmem:[#allocation10 + $0x320] sm:$0xff]
    %v972 = vld [vmem:[#allocation10 + $0x328] sm:$0xff]
    %v973 = vld [vmem:[#allocation10 + $0x330] sm:$0xff]
    %v974 = vld [vmem:[#allocation10 + $0x338] sm:$0xff]
    %v975 = vld [vmem:[#allocation10 + $0x340] sm:$0xff]
    %v976 = vld [vmem:[#allocation10 + $0x348] sm:$0xff]
    %v977 = vld [vmem:[#allocation10 + $0x350] sm:$0xff]
    %v978 = vld [vmem:[#allocation10 + $0x358] sm:$0xff]
    %v979 = vld [vmem:[#allocation10 + $0x360] sm:$0xff]
    %v980 = vld [vmem:[#allocation10 + $0x368] sm:$0xff]
    %v981 = vld [vmem:[#allocation10 + $0x370] sm:$0xff]
    %v982 = vld [vmem:[#allocation10 + $0x378] sm:$0xff]
    %v983 = vld [vmem:[#allocation10 + $0x380] sm:$0xff]
    %v984 = vld [vmem:[#allocation10 + $0x388] sm:$0xff]
    %v985 = vld [vmem:[#allocation10 + $0x390] sm:$0xff]
    %v986 = vld [vmem:[#allocation10 + $0x398] sm:$0xff]
    %v987 = vld [vmem:[#allocation10 + $0x3a0] sm:$0xff]
    %v988 = vld [vmem:[#allocation10 + $0x3a8] sm:$0xff]
    %v989 = vld [vmem:[#allocation10 + $0x3b0] sm:$0xff]
    %v990 = vld [vmem:[#allocation10 + $0x3b8] sm:$0xff]
    %v991 = vld [vmem:[#allocation10 + $0x3c0] sm:$0xff]
    %v992 = vld [vmem:[#allocation10 + $0x3c8] sm:$0xff]
    %v993 = vld [vmem:[#allocation10 + $0x3d0] sm:$0xff]
    %v994 = vld [vmem:[#allocation10 + $0x3d8] sm:$0xff]
    %v995 = vld [vmem:[#allocation10 + $0x3e0] sm:$0xff]
    %v996 = vld [vmem:[#allocation10 + $0x3e8] sm:$0xff]
    %v997 = vld [vmem:[#allocation10 + $0x3f0] sm:$0xff]
    %v998 = vld [vmem:[#allocation10 + $0x3f8] sm:$0xff]
    %v999 = vld [vmem:[#allocation10 + $0x400] sm:$0xff]
    %v1000 = vld [vmem:[#allocation10 + $0x408] sm:$0xff]
    %v1001 = vld [vmem:[#allocation10 + $0x410] sm:$0xff]
    %v1002 = vld [vmem:[#allocation10 + $0x418] sm:$0xff]
    %v1003 = vld [vmem:[#allocation10 + $0x420] sm:$0xff]
    %v1004 = vld [vmem:[#allocation10 + $0x428] sm:$0xff]
    %v1005 = vld [vmem:[#allocation10 + $0x430] sm:$0xff]
    %v1006 = vld [vmem:[#allocation10 + $0x438] sm:$0xff]
    %v1007 = vld [vmem:[#allocation10 + $0x440] sm:$0xff]
    %v1008 = vld [vmem:[#allocation10 + $0x448] sm:$0xff]
    %v1009 = vld [vmem:[#allocation10 + $0x450] sm:$0xff]
    %v1010 = vld [vmem:[#allocation10 + $0x458] sm:$0xff]
    %v1011 = vld [vmem:[#allocation10 + $0x460] sm:$0xff]
    %v1012 = vld [vmem:[#allocation10 + $0x468] sm:$0xff]
    %v1013 = vld [vmem:[#allocation10 + $0x470] sm:$0xff]
    %v1014 = vld [vmem:[#allocation10 + $0x478] sm:$0xff]
    %v1015 = vld [vmem:[#allocation10 + $0x480] sm:$0xff]
    %v1016 = vld [vmem:[#allocation10 + $0x488] sm:$0xff]
    %v1017 = vld [vmem:[#allocation10 + $0x490] sm:$0xff]
    %v1018 = vld [vmem:[#allocation10 + $0x498] sm:$0xff]
    %v1019 = vld [vmem:[#allocation10 + $0x4a0] sm:$0xff]
    %v1020 = vld [vmem:[#allocation10 + $0x4a8] sm:$0xff]
    %v1021 = vld [vmem:[#allocation10 + $0x4b0] sm:$0xff]
    %v1022 = vld [vmem:[#allocation10 + $0x4b8] sm:$0xff]
    %v1023 = vld [vmem:[#allocation10 + $0x4c0] sm:$0xff]
    %v1024 = vld [vmem:[#allocation10 + $0x4c8] sm:$0xff]
    %v1025 = vld [vmem:[#allocation10 + $0x4d0] sm:$0xff]
    %v1026 = vld [vmem:[#allocation10 + $0x4d8] sm:$0xff]
    %v1027 = vld [vmem:[#allocation10 + $0x4e0] sm:$0xff]
    %v1028 = vld [vmem:[#allocation10 + $0x4e8] sm:$0xff]
    %v1029 = vld [vmem:[#allocation10 + $0x4f0] sm:$0xff]
    %v1030 = vld [vmem:[#allocation10 + $0x4f8] sm:$0xff]
    %v1031 = vld [vmem:[#allocation10 + $0x500] sm:$0xff]
    %v1032 = vld [vmem:[#allocation10 + $0x508] sm:$0xff]
    %v1033 = vld [vmem:[#allocation10 + $0x510] sm:$0xff]
    %v1034 = vld [vmem:[#allocation10 + $0x518] sm:$0xff]
    %v1035 = vld [vmem:[#allocation10 + $0x520] sm:$0xff]
    %v1036 = vld [vmem:[#allocation10 + $0x528] sm:$0xff]
    %v1037 = vld [vmem:[#allocation10 + $0x530] sm:$0xff]
    %v1038 = vld [vmem:[#allocation10 + $0x538] sm:$0xff]
    %v1039 = vld [vmem:[#allocation10 + $0x540] sm:$0xff]
    %v1040 = vld [vmem:[#allocation10 + $0x548] sm:$0xff]
    %v1041 = vld [vmem:[#allocation10 + $0x550] sm:$0xff]
    %v1042 = vld [vmem:[#allocation10 + $0x558] sm:$0xff]
    %v1043 = vld [vmem:[#allocation10 + $0x560] sm:$0xff]
    %v1044 = vld [vmem:[#allocation10 + $0x568] sm:$0xff]
    %v1045 = vld [vmem:[#allocation10 + $0x570] sm:$0xff]
    %v1046 = vld [vmem:[#allocation10 + $0x578] sm:$0xff]
    %v1047 = vld [vmem:[#allocation10 + $0x580] sm:$0xff]
    %v1048 = vld [vmem:[#allocation10 + $0x588] sm:$0xff]
    %v1049 = vld [vmem:[#allocation10 + $0x590] sm:$0xff]
    %v1050 = vld [vmem:[#allocation10 + $0x598] sm:$0xff]
    %v1051 = vld [vmem:[#allocation10 + $0x5a0] sm:$0xff]
    %v1052 = vld [vmem:[#allocation10 + $0x5a8] sm:$0xff]
    %v1053 = vld [vmem:[#allocation10 + $0x5b0] sm:$0xff]
    %v1054 = vld [vmem:[#allocation10 + $0x5b8] sm:$0xff]
    %v1055 = vld [vmem:[#allocation10 + $0x5c0] sm:$0xff]
    %v1056 = vld [vmem:[#allocation10 + $0x5c8] sm:$0xff]
    %v1057 = vld [vmem:[#allocation10 + $0x5d0] sm:$0xff]
    %v1058 = vld [vmem:[#allocation10 + $0x5d8] sm:$0xff]
    %v1059 = vld [vmem:[#allocation10 + $0x5e0] sm:$0xff]
    %v1060 = vld [vmem:[#allocation10 + $0x5e8] sm:$0xff]
    %v1061 = vld [vmem:[#allocation10 + $0x5f0] sm:$0xff]
    %v1062 = vld [vmem:[#allocation10 + $0x5f8] sm:$0xff]
    %v1063 = vld [vmem:[#allocation10 + $0x600] sm:$0xff]
    %v1064 = vld [vmem:[#allocation10 + $0x608] sm:$0xff]
    %v1065 = vld [vmem:[#allocation10 + $0x610] sm:$0xff]
    %v1066 = vld [vmem:[#allocation10 + $0x618] sm:$0xff]
    %v1067 = vld [vmem:[#allocation10 + $0x620] sm:$0xff]
    %v1068 = vld [vmem:[#allocation10 + $0x628] sm:$0xff]
    %v1069 = vld [vmem:[#allocation10 + $0x630] sm:$0xff]
    %v1070 = vld [vmem:[#allocation10 + $0x638] sm:$0xff]
    %v1071 = vld [vmem:[#allocation10 + $0x640] sm:$0xff]
    %v1072 = vld [vmem:[#allocation10 + $0x648] sm:$0xff]
    %v1073 = vld [vmem:[#allocation10 + $0x650] sm:$0xff]
    %v1074 = vld [vmem:[#allocation10 + $0x658] sm:$0xff]
    %v1075 = vld [vmem:[#allocation10 + $0x660] sm:$0xff]
    %v1076 = vld [vmem:[#allocation10 + $0x668] sm:$0xff]
    %v1077 = vld [vmem:[#allocation10 + $0x670] sm:$0xff]
    %v1078 = vld [vmem:[#allocation10 + $0x678] sm:$0xff]
    %v1079 = vld [vmem:[#allocation10 + $0x680] sm:$0xff]
    %v1080 = vld [vmem:[#allocation10 + $0x688] sm:$0xff]
    %v1081 = vld [vmem:[#allocation10 + $0x690] sm:$0xff]
    %v1082 = vld [vmem:[#allocation10 + $0x698] sm:$0xff]
    %v1083 = vld [vmem:[#allocation10 + $0x6a0] sm:$0xff]
    %v1084 = vld [vmem:[#allocation10 + $0x6a8] sm:$0xff]
    %v1085 = vld [vmem:[#allocation10 + $0x6b0] sm:$0xff]
    %v1086 = vld [vmem:[#allocation10 + $0x6b8] sm:$0xff]
    %v1087 = vld [vmem:[#allocation10 + $0x6c0] sm:$0xff]
    %v1088 = vld [vmem:[#allocation10 + $0x6c8] sm:$0xff]
    %v1089 = vld [vmem:[#allocation10 + $0x6d0] sm:$0xff]
    %v1090 = vld [vmem:[#allocation10 + $0x6d8] sm:$0xff]
    %v1091 = vld [vmem:[#allocation10 + $0x6e0] sm:$0xff]
    %v1092 = vld [vmem:[#allocation10 + $0x6e8] sm:$0xff]
    %v1093 = vld [vmem:[#allocation10 + $0x6f0] sm:$0xff]
    %v1094 = vld [vmem:[#allocation10 + $0x6f8] sm:$0xff]
    %v1095 = vld [vmem:[#allocation10 + $0x700] sm:$0xff]
    %v1096 = vld [vmem:[#allocation10 + $0x708] sm:$0xff]
    %v1097 = vld [vmem:[#allocation10 + $0x710] sm:$0xff]
    %v1098 = vld [vmem:[#allocation10 + $0x718] sm:$0xff]
    %v1099 = vld [vmem:[#allocation10 + $0x720] sm:$0xff]
    %v1100 = vld [vmem:[#allocation10 + $0x728] sm:$0xff]
    %v1101 = vld [vmem:[#allocation10 + $0x730] sm:$0xff]
    %v1102 = vld [vmem:[#allocation10 + $0x738] sm:$0xff]
    %v1103 = vld [vmem:[#allocation10 + $0x740] sm:$0xff]
    %v1104 = vld [vmem:[#allocation10 + $0x748] sm:$0xff]
    %v1105 = vld [vmem:[#allocation10 + $0x750] sm:$0xff]
    %v1106 = vld [vmem:[#allocation10 + $0x758] sm:$0xff]
    %v1107 = vld [vmem:[#allocation10 + $0x760] sm:$0xff]
    %v1108 = vld [vmem:[#allocation10 + $0x768] sm:$0xff]
    %v1109 = vld [vmem:[#allocation10 + $0x770] sm:$0xff]
    %v1110 = vld [vmem:[#allocation10 + $0x778] sm:$0xff]
    %v1111 = vld [vmem:[#allocation10 + $0x780] sm:$0xff]
    %v1112 = vld [vmem:[#allocation10 + $0x788] sm:$0xff]
    %v1113 = vld [vmem:[#allocation10 + $0x790] sm:$0xff]
    %v1114 = vld [vmem:[#allocation10 + $0x798] sm:$0xff]
    %v1115 = vld [vmem:[#allocation10 + $0x7a0] sm:$0xff]
    %v1116 = vld [vmem:[#allocation10 + $0x7a8] sm:$0xff]
    %v1117 = vld [vmem:[#allocation10 + $0x7b0] sm:$0xff]
    %v1118 = vld [vmem:[#allocation10 + $0x7b8] sm:$0xff]
    %v1119 = vld [vmem:[#allocation10 + $0x7c0] sm:$0xff]
    %v1120 = vld [vmem:[#allocation10 + $0x7c8] sm:$0xff]
    %v1121 = vld [vmem:[#allocation10 + $0x7d0] sm:$0xff]
    %v1122 = vld [vmem:[#allocation10 + $0x7d8] sm:$0xff]
    %v1123 = vld [vmem:[#allocation10 + $0x7e0] sm:$0xff]
    %v1124 = vld [vmem:[#allocation10 + $0x7e8] sm:$0xff]
    %v1125 = vld [vmem:[#allocation10 + $0x7f0] sm:$0xff]
    %v1126 = vld [vmem:[#allocation10 + $0x7f8] sm:$0xff]
    %v1127 = vld [vmem:[%s6] sm:$0xf]
    %v1129 = vlaneseq
    %v1130 = vshrl.u32 %v1129, 7
    %v1131 = vsub.s32 0, %v1130
    %v1132 = vrot.slane %v1127, %v1131
    %v1133 = vlaneseq
    %v1134 = vshrl.u32 %v1133, 7
    %v1135 = vsub.s32 1, %v1134
    %v1136 = vrot.slane %v1127, %v1135
    %v1137 = vlaneseq
    %v1138 = vshrl.u32 %v1137, 7
    %v1139 = vsub.s32 2, %v1138
    %v1140 = vrot.slane %v1127, %v1139
    %v1141 = vlaneseq
    %v1142 = vshrl.u32 %v1141, 7
    %v1143 = vsub.s32 3, %v1142
    %v1144 = vrot.slane %v1127, %v1143
    %1149 = vmatprep.subr.mxu0 %v932
    %1150 = vmatpush1.msra.mxu0 %v931
    %1151 = vmatprep.subr.mxu0 %v928
    %1152 = vmatpush1.msra.mxu0 %v927
    %1153 = vmatprep.subr.mxu0 %v924
    %1154 = vmatpush1.msra.mxu0 %v923
    %1155 = vmatprep.subr.mxu0 %v920
    %1156 = vmatpush1.msra.mxu0 %v919
    %1157 = vmatprep.subr.mxu0 %v916
    %1158 = vmatpush1.msra.mxu0 %v915
    %1159 = vmatprep.subr.mxu0 %v912
    %1160 = vmatpush1.msra.mxu0 %v911
    %1161 = vmatprep.subr.mxu0 %v908
    %1162 = vmatpush1.msra.mxu0 %v907
    %1163 = vmatprep.subr.mxu0 %v904
    %1164 = vmatpush1.msra.mxu0 %v903
    %1165 = vmatprep.subr.mxu0 %v900
    %1166 = vmatpush1.msra.mxu0 %v899
    %1167 = vmatprep.subr.mxu0 %v896
    %1168 = vmatpush1.msra.mxu0 %v895
    %1169 = vmatprep.subr.mxu0 %v892
    %1170 = vmatpush1.msra.mxu0 %v891
    %1171 = vmatprep.subr.mxu0 %v888
    %1172 = vmatpush1.msra.mxu0 %v887
    %1173 = vmatprep.subr.mxu0 %v884
    %1174 = vmatpush1.msra.mxu0 %v883
    %1175 = vmatprep.subr.mxu0 %v880
    %1176 = vmatpush1.msra.mxu0 %v879
    %1177 = vmatprep.subr.mxu0 %v876
    %1178 = vmatpush1.msra.mxu0 %v875
    %1179 = vmatprep.subr.mxu0 %v872
    %1180 = vmatpush1.msra.mxu0 %v871
    %1181 = vmatprep.subr.mxu0 %v996
    %1182 = vmatpush2.msra.mxu0 %v995
    %1183 = vmatprep.subr.mxu0 %v992
    %1184 = vmatpush2.msra.mxu0 %v991
    %1185 = vmatprep.subr.mxu0 %v988
    %1186 = vmatpush2.msra.mxu0 %v987
    %1187 = vmatprep.subr.mxu0 %v984
    %1188 = vmatpush2.msra.mxu0 %v983
    %1189 = vmatprep.subr.mxu0 %v980
    %1190 = vmatpush2.msra.mxu0 %v979
    %1191 = vmatprep.subr.mxu0 %v976
    %1192 = vmatpush2.msra.mxu0 %v975
    %1193 = vmatprep.subr.mxu0 %v972
    %1194 = vmatpush2.msra.mxu0 %v971
    %1195 = vmatprep.subr.mxu0 %v968
    %1196 = vmatpush2.msra.mxu0 %v967
    %1197 = vmatprep.subr.mxu0 %v964
    %1198 = vmatpush2.msra.mxu0 %v963
    %1199 = vmatprep.subr.mxu0 %v960
    %1200 = vmatpush2.msra.mxu0 %v959
    %1201 = vmatprep.subr.mxu0 %v956
    %1202 = vmatpush2.msra.mxu0 %v955
    %1203 = vmatprep.subr.mxu0 %v952
    %1204 = vmatpush2.msra.mxu0 %v951
    %1205 = vmatprep.subr.mxu0 %v948
    %1206 = vmatpush2.msra.mxu0 %v947
    %1207 = vmatprep.subr.mxu0 %v944
    %1208 = vmatpush2.msra.mxu0 %v943
    %1209 = vmatprep.subr.mxu0 %v940
    %1210 = vmatpush2.msra.mxu0 %v939
    %1211 = vmatprep.subr.mxu0 %v936
    %1212 = vmatpush2.msra.mxu0 %v935
    %1213 = vmatprep.mubr.f32.mxu0 %v868
    %1214 = vmatmul.mubr.f32.gmra.mxu0 %v867
    %v1215 = vpop.f32.mrf.mxu0
    %v1216 = vadd.f32 %v1132, %v1215
    %v1217 = vpop.f32.mrf.mxu0
    %v1218 = vadd.f32 %v1136, %v1217
    %1219 = vdwg.mxu0
    %1220 = vmatprep.subr.mxu0 %v1060
    %1221 = vmatpush1.msra.mxu0 %v1059
    %1222 = vmatprep.subr.mxu0 %v1056
    %1223 = vmatpush1.msra.mxu0 %v1055
    %1224 = vmatprep.subr.mxu0 %v1052
    %1225 = vmatpush1.msra.mxu0 %v1051
    %1226 = vmatprep.subr.mxu0 %v1048
    %1227 = vmatpush1.msra.mxu0 %v1047
    %1228 = vmatprep.subr.mxu0 %v1044
    %1229 = vmatpush1.msra.mxu0 %v1043
    %1230 = vmatprep.subr.mxu0 %v1040
    %1231 = vmatpush1.msra.mxu0 %v1039
    %1232 = vmatprep.subr.mxu0 %v1036
    %1233 = vmatpush1.msra.mxu0 %v1035
    %1234 = vmatprep.subr.mxu0 %v1032
    %1235 = vmatpush1.msra.mxu0 %v1031
    %1236 = vmatprep.subr.mxu0 %v1028
    %1237 = vmatpush1.msra.mxu0 %v1027
    %1238 = vmatprep.subr.mxu0 %v1024
    %1239 = vmatpush1.msra.mxu0 %v1023
    %1240 = vmatprep.subr.mxu0 %v1020
    %1241 = vmatpush1.msra.mxu0 %v1019
    %1242 = vmatprep.subr.mxu0 %v1016
    %1243 = vmatpush1.msra.mxu0 %v1015
    %1244 = vmatprep.subr.mxu0 %v1012
    %1245 = vmatpush1.msra.mxu0 %v1011
    %1246 = vmatprep.subr.mxu0 %v1008
    %1247 = vmatpush1.msra.mxu0 %v1007
    %1248 = vmatprep.subr.mxu0 %v1004
    %1249 = vmatpush1.msra.mxu0 %v1003
    %1250 = vmatprep.subr.mxu0 %v1000
    %1251 = vmatpush1.msra.mxu0 %v999
    %1252 = vmatprep.subr.mxu0 %v1124
    %1253 = vmatpush2.msra.mxu0 %v1123
    %1254 = vmatprep.subr.mxu0 %v1120
    %1255 = vmatpush2.msra.mxu0 %v1119
    %1256 = vmatprep.subr.mxu0 %v1116
    %1257 = vmatpush2.msra.mxu0 %v1115
    %1258 = vmatprep.subr.mxu0 %v1112
    %1259 = vmatpush2.msra.mxu0 %v1111
    %1260 = vmatprep.subr.mxu0 %v1108
    %1261 = vmatpush2.msra.mxu0 %v1107
    %1262 = vmatprep.subr.mxu0 %v1104
    %1263 = vmatpush2.msra.mxu0 %v1103
    %1264 = vmatprep.subr.mxu0 %v1100
    %1265 = vmatpush2.msra.mxu0 %v1099
    %1266 = vmatprep.subr.mxu0 %v1096
    %1267 = vmatpush2.msra.mxu0 %v1095
    %1268 = vmatprep.subr.mxu0 %v1092
    %1269 = vmatpush2.msra.mxu0 %v1091
    %1270 = vmatprep.subr.mxu0 %v1088
    %1271 = vmatpush2.msra.mxu0 %v1087
    %1272 = vmatprep.subr.mxu0 %v1084
    %1273 = vmatpush2.msra.mxu0 %v1083
    %1274 = vmatprep.subr.mxu0 %v1080
    %1275 = vmatpush2.msra.mxu0 %v1079
    %1276 = vmatprep.subr.mxu0 %v1076
    %1277 = vmatpush2.msra.mxu0 %v1075
    %1278 = vmatprep.subr.mxu0 %v1072
    %1279 = vmatpush2.msra.mxu0 %v1071
    %1280 = vmatprep.subr.mxu0 %v1068
    %1281 = vmatpush2.msra.mxu0 %v1067
    %1282 = vmatprep.subr.mxu0 %v1064
    %1283 = vmatpush2.msra.mxu0 %v1063
    %1284 = vmatprep.mubr.f32.mxu0 %v870
    %1285 = vmatmul.mubr.f32.gmra.mxu0 %v869
    %v1286 = vpop.f32.mrf.mxu0
    %v1287 = vadd.f32 %v1216, %v1286
    %v1288 = vpop.f32.mrf.mxu0
    %v1289 = vadd.f32 %v1218, %v1288
    %1290 = vdwg.mxu0
    %1291 = vmatprep.subr.mxu0 %v934
    %1292 = vmatpush1.msra.mxu0 %v933
    %1293 = vmatprep.subr.mxu0 %v930
    %1294 = vmatpush1.msra.mxu0 %v929
    %1295 = vmatprep.subr.mxu0 %v926
    %1296 = vmatpush1.msra.mxu0 %v925
    %1297 = vmatprep.subr.mxu0 %v922
    %1298 = vmatpush1.msra.mxu0 %v921
    %1299 = vmatprep.subr.mxu0 %v918
    %1300 = vmatpush1.msra.mxu0 %v917
    %1301 = vmatprep.subr.mxu0 %v914
    %1302 = vmatpush1.msra.mxu0 %v913
    %1303 = vmatprep.subr.mxu0 %v910
    %1304 = vmatpush1.msra.mxu0 %v909
    %1305 = vmatprep.subr.mxu0 %v906
    %1306 = vmatpush1.msra.mxu0 %v905
    %1307 = vmatprep.subr.mxu0 %v902
    %1308 = vmatpush1.msra.mxu0 %v901
    %1309 = vmatprep.subr.mxu0 %v898
    %1310 = vmatpush1.msra.mxu0 %v897
    %1311 = vmatprep.subr.mxu0 %v894
    %1312 = vmatpush1.msra.mxu0 %v893
    %1313 = vmatprep.subr.mxu0 %v890
    %1314 = vmatpush1.msra.mxu0 %v889
    %1315 = vmatprep.subr.mxu0 %v886
    %1316 = vmatpush1.msra.mxu0 %v885
    %1317 = vmatprep.subr.mxu0 %v882
    %1318 = vmatpush1.msra.mxu0 %v881
    %1319 = vmatprep.subr.mxu0 %v878
    %1320 = vmatpush1.msra.mxu0 %v877
    %1321 = vmatprep.subr.mxu0 %v874
    %1322 = vmatpush1.msra.mxu0 %v873
    %1323 = vmatprep.subr.mxu0 %v998
    %1324 = vmatpush2.msra.mxu0 %v997
    %1325 = vmatprep.subr.mxu0 %v994
    %1326 = vmatpush2.msra.mxu0 %v993
    %1327 = vmatprep.subr.mxu0 %v990
    %1328 = vmatpush2.msra.mxu0 %v989
    %1329 = vmatprep.subr.mxu0 %v986
    %1330 = vmatpush2.msra.mxu0 %v985
    %1331 = vmatprep.subr.mxu0 %v982
    %1332 = vmatpush2.msra.mxu0 %v981
    %1333 = vmatprep.subr.mxu0 %v978
    %1334 = vmatpush2.msra.mxu0 %v977
    %1335 = vmatprep.subr.mxu0 %v974
    %1336 = vmatpush2.msra.mxu0 %v973
    %1337 = vmatprep.subr.mxu0 %v970
    %1338 = vmatpush2.msra.mxu0 %v969
    %1339 = vmatprep.subr.mxu0 %v966
    %1340 = vmatpush2.msra.mxu0 %v965
    %1341 = vmatprep.subr.mxu0 %v962
    %1342 = vmatpush2.msra.mxu0 %v961
    %1343 = vmatprep.subr.mxu0 %v958
    %1344 = vmatpush2.msra.mxu0 %v957
    %1345 = vmatprep.subr.mxu0 %v954
    %1346 = vmatpush2.msra.mxu0 %v953
    %1347 = vmatprep.subr.mxu0 %v950
    %1348 = vmatpush2.msra.mxu0 %v949
    %1349 = vmatprep.subr.mxu0 %v946
    %1350 = vmatpush2.msra.mxu0 %v945
    %1351 = vmatprep.subr.mxu0 %v942
    %1352 = vmatpush2.msra.mxu0 %v941
    %1353 = vmatprep.subr.mxu0 %v938
    %1354 = vmatpush2.msra.mxu0 %v937
    %1355 = vmatprep.mubr.f32.mxu0 %v868
    %1356 = vmatmul.mubr.f32.gmra.mxu0 %v867
    %v1357 = vpop.f32.mrf.mxu0
    %v1358 = vadd.f32 %v1140, %v1357
    %v1359 = vpop.f32.mrf.mxu0
    %v1360 = vadd.f32 %v1144, %v1359
    %1361 = vdwg.mxu0
    %1362 = vmatprep.subr.mxu0 %v1062
    %1363 = vmatpush1.msra.mxu0 %v1061
    %1364 = vmatprep.subr.mxu0 %v1058
    %1365 = vmatpush1.msra.mxu0 %v1057
    %1366 = vmatprep.subr.mxu0 %v1054
    %1367 = vmatpush1.msra.mxu0 %v1053
    %1368 = vmatprep.subr.mxu0 %v1050
    %1369 = vmatpush1.msra.mxu0 %v1049
    %1370 = vmatprep.subr.mxu0 %v1046
    %1371 = vmatpush1.msra.mxu0 %v1045
    %1372 = vmatprep.subr.mxu0 %v1042
    %1373 = vmatpush1.msra.mxu0 %v1041
    %1374 = vmatprep.subr.mxu0 %v1038
    %1375 = vmatpush1.msra.mxu0 %v1037
    %1376 = vmatprep.subr.mxu0 %v1034
    %1377 = vmatpush1.msra.mxu0 %v1033
    %1378 = vmatprep.subr.mxu0 %v1030
    %1379 = vmatpush1.msra.mxu0 %v1029
    %1380 = vmatprep.subr.mxu0 %v1026
    %1381 = vmatpush1.msra.mxu0 %v1025
    %1382 = vmatprep.subr.mxu0 %v1022
    %1383 = vmatpush1.msra.mxu0 %v1021
    %1384 = vmatprep.subr.mxu0 %v1018
    %1385 = vmatpush1.msra.mxu0 %v1017
    %1386 = vmatprep.subr.mxu0 %v1014
    %1387 = vmatpush1.msra.mxu0 %v1013
    %1388 = vmatprep.subr.mxu0 %v1010
    %1389 = vmatpush1.msra.mxu0 %v1009
    %1390 = vmatprep.subr.mxu0 %v1006
    %1391 = vmatpush1.msra.mxu0 %v1005
    %1392 = vmatprep.subr.mxu0 %v1002
    %1393 = vmatpush1.msra.mxu0 %v1001
    %1394 = vmatprep.subr.mxu0 %v1126
    %1395 = vmatpush2.msra.mxu0 %v1125
    %1396 = vmatprep.subr.mxu0 %v1122
    %1397 = vmatpush2.msra.mxu0 %v1121
    %1398 = vmatprep.subr.mxu0 %v1118
    %1399 = vmatpush2.msra.mxu0 %v1117
    %1400 = vmatprep.subr.mxu0 %v1114
    %1401 = vmatpush2.msra.mxu0 %v1113
    %1402 = vmatprep.subr.mxu0 %v1110
    %1403 = vmatpush2.msra.mxu0 %v1109
    %1404 = vmatprep.subr.mxu0 %v1106
    %1405 = vmatpush2.msra.mxu0 %v1105
    %1406 = vmatprep.subr.mxu0 %v1102
    %1407 = vmatpush2.msra.mxu0 %v1101
    %1408 = vmatprep.subr.mxu0 %v1098
    %1409 = vmatpush2.msra.mxu0 %v1097
    %1410 = vmatprep.subr.mxu0 %v1094
    %1411 = vmatpush2.msra.mxu0 %v1093
    %1412 = vmatprep.subr.mxu0 %v1090
    %1413 = vmatpush2.msra.mxu0 %v1089
    %1414 = vmatprep.subr.mxu0 %v1086
    %1415 = vmatpush2.msra.mxu0 %v1085
    %1416 = vmatprep.subr.mxu0 %v1082
    %1417 = vmatpush2.msra.mxu0 %v1081
    %1418 = vmatprep.subr.mxu0 %v1078
    %1419 = vmatpush2.msra.mxu0 %v1077
    %1420 = vmatprep.subr.mxu0 %v1074
    %1421 = vmatpush2.msra.mxu0 %v1073
    %1422 = vmatprep.subr.mxu0 %v1070
    %1423 = vmatpush2.msra.mxu0 %v1069
    %1424 = vmatprep.subr.mxu0 %v1066
    %1425 = vmatpush2.msra.mxu0 %v1065
    %1426 = vmatprep.mubr.f32.mxu0 %v870
    %1427 = vmatmul.mubr.f32.gmra.mxu0 %v869
    %v1428 = vpop.f32.mrf.mxu0
    %v1429 = vadd.f32 %v1358, %v1428
    %v1430 = vpop.f32.mrf.mxu0
    %v1431 = vadd.f32 %v1360, %v1430
    %1432 = vdwg.mxu0
    %v1433 = vmax.f32 %v1287, 0.0
    %v1434 = vmax.f32 %v1289, 0.0
    %v1435 = vmax.f32 %v1429, 0.0
    %v1436 = vmax.f32 %v1431, 0.0
    %v1437 = vld [vmem:[#allocation11] sm:$0xff]
    %v1438 = vld [vmem:[#allocation11 + $0x8] sm:$0xff]
    %v1439 = vld [vmem:[#allocation11 + $0x10] sm:$0xff]
    %v1440 = vld [vmem:[#allocation11 + $0x18] sm:$0xff]
    %v1441 = vld [vmem:[#allocation11 + $0x20] sm:$0xff]
    %v1442 = vld [vmem:[#allocation11 + $0x28] sm:$0xff]
    %v1443 = vld [vmem:[#allocation11 + $0x30] sm:$0xff]
    %v1444 = vld [vmem:[#allocation11 + $0x38] sm:$0xff]
    %v1445 = vld [vmem:[#allocation11 + $0x40] sm:$0xff]
    %v1446 = vld [vmem:[#allocation11 + $0x48] sm:$0xff]
    %v1447 = vld [vmem:[#allocation11 + $0x50] sm:$0xff]
    %v1448 = vld [vmem:[#allocation11 + $0x58] sm:$0xff]
    %v1449 = vld [vmem:[#allocation11 + $0x60] sm:$0xff]
    %v1450 = vld [vmem:[#allocation11 + $0x68] sm:$0xff]
    %v1451 = vld [vmem:[#allocation11 + $0x70] sm:$0xff]
    %v1452 = vld [vmem:[#allocation11 + $0x78] sm:$0xff]
    %v1453 = vld [vmem:[#allocation11 + $0x80] sm:$0xff]
    %v1454 = vld [vmem:[#allocation11 + $0x88] sm:$0xff]
    %v1455 = vld [vmem:[#allocation11 + $0x90] sm:$0xff]
    %v1456 = vld [vmem:[#allocation11 + $0x98] sm:$0xff]
    %v1457 = vld [vmem:[#allocation11 + $0xa0] sm:$0xff]
    %v1458 = vld [vmem:[#allocation11 + $0xa8] sm:$0xff]
    %v1459 = vld [vmem:[#allocation11 + $0xb0] sm:$0xff]
    %v1460 = vld [vmem:[#allocation11 + $0xb8] sm:$0xff]
    %v1461 = vld [vmem:[#allocation11 + $0xc0] sm:$0xff]
    %v1462 = vld [vmem:[#allocation11 + $0xc8] sm:$0xff]
    %v1463 = vld [vmem:[#allocation11 + $0xd0] sm:$0xff]
    %v1464 = vld [vmem:[#allocation11 + $0xd8] sm:$0xff]
    %v1465 = vld [vmem:[#allocation11 + $0xe0] sm:$0xff]
    %v1466 = vld [vmem:[#allocation11 + $0xe8] sm:$0xff]
    %v1467 = vld [vmem:[#allocation11 + $0xf0] sm:$0xff]
    %v1468 = vld [vmem:[#allocation11 + $0xf8] sm:$0xff]
    %v1469 = vld [vmem:[#allocation11 + $0x100] sm:$0xff]
    %v1470 = vld [vmem:[#allocation11 + $0x108] sm:$0xff]
    %v1471 = vld [vmem:[#allocation11 + $0x110] sm:$0xff]
    %v1472 = vld [vmem:[#allocation11 + $0x118] sm:$0xff]
    %v1473 = vld [vmem:[#allocation11 + $0x120] sm:$0xff]
    %v1474 = vld [vmem:[#allocation11 + $0x128] sm:$0xff]
    %v1475 = vld [vmem:[#allocation11 + $0x130] sm:$0xff]
    %v1476 = vld [vmem:[#allocation11 + $0x138] sm:$0xff]
    %v1477 = vld [vmem:[#allocation11 + $0x140] sm:$0xff]
    %v1478 = vld [vmem:[#allocation11 + $0x148] sm:$0xff]
    %v1479 = vld [vmem:[#allocation11 + $0x150] sm:$0xff]
    %v1480 = vld [vmem:[#allocation11 + $0x158] sm:$0xff]
    %v1481 = vld [vmem:[#allocation11 + $0x160] sm:$0xff]
    %v1482 = vld [vmem:[#allocation11 + $0x168] sm:$0xff]
    %v1483 = vld [vmem:[#allocation11 + $0x170] sm:$0xff]
    %v1484 = vld [vmem:[#allocation11 + $0x178] sm:$0xff]
    %v1485 = vld [vmem:[#allocation11 + $0x180] sm:$0xff]
    %v1486 = vld [vmem:[#allocation11 + $0x188] sm:$0xff]
    %v1487 = vld [vmem:[#allocation11 + $0x190] sm:$0xff]
    %v1488 = vld [vmem:[#allocation11 + $0x198] sm:$0xff]
    %v1489 = vld [vmem:[#allocation11 + $0x1a0] sm:$0xff]
    %v1490 = vld [vmem:[#allocation11 + $0x1a8] sm:$0xff]
    %v1491 = vld [vmem:[#allocation11 + $0x1b0] sm:$0xff]
    %v1492 = vld [vmem:[#allocation11 + $0x1b8] sm:$0xff]
    %v1493 = vld [vmem:[#allocation11 + $0x1c0] sm:$0xff]
    %v1494 = vld [vmem:[#allocation11 + $0x1c8] sm:$0xff]
    %v1495 = vld [vmem:[#allocation11 + $0x1d0] sm:$0xff]
    %v1496 = vld [vmem:[#allocation11 + $0x1d8] sm:$0xff]
    %v1497 = vld [vmem:[#allocation11 + $0x1e0] sm:$0xff]
    %v1498 = vld [vmem:[#allocation11 + $0x1e8] sm:$0xff]
    %v1499 = vld [vmem:[#allocation11 + $0x1f0] sm:$0xff]
    %v1500 = vld [vmem:[#allocation11 + $0x1f8] sm:$0xff]
    %v1501 = vld [vmem:[%s8] sm:$0x1]
    %v1503 = vlaneseq
    %v1504 = vshrl.u32 %v1503, 7
    %v1505 = vsub.s32 0, %v1504
    %v1506 = vrot.slane %v1501, %v1505
    %1508 = vmatprep.subr.mxu0 0.0
    %1509 = vmatpush1.msra.mxu0 %v1452
    %1510 = vmatprep.subr.mxu0 0.0
    %1511 = vmatpush1.msra.mxu0 %v1451
    %1512 = vmatprep.subr.mxu0 0.0
    %1513 = vmatpush1.msra.mxu0 %v1450
    %1514 = vmatprep.subr.mxu0 0.0
    %1515 = vmatpush1.msra.mxu0 %v1449
    %1516 = vmatprep.subr.mxu0 0.0
    %1517 = vmatpush1.msra.mxu0 %v1448
    %1518 = vmatprep.subr.mxu0 0.0
    %1519 = vmatpush1.msra.mxu0 %v1447
    %1520 = vmatprep.subr.mxu0 0.0
    %1521 = vmatpush1.msra.mxu0 %v1446
    %1522 = vmatprep.subr.mxu0 0.0
    %1523 = vmatpush1.msra.mxu0 %v1445
    %1524 = vmatprep.subr.mxu0 0.0
    %1525 = vmatpush1.msra.mxu0 %v1444
    %1526 = vmatprep.subr.mxu0 0.0
    %1527 = vmatpush1.msra.mxu0 %v1443
    %1528 = vmatprep.subr.mxu0 0.0
    %1529 = vmatpush1.msra.mxu0 %v1442
    %1530 = vmatprep.subr.mxu0 0.0
    %1531 = vmatpush1.msra.mxu0 %v1441
    %1532 = vmatprep.subr.mxu0 0.0
    %1533 = vmatpush1.msra.mxu0 %v1440
    %1534 = vmatprep.subr.mxu0 0.0
    %1535 = vmatpush1.msra.mxu0 %v1439
    %1536 = vmatprep.subr.mxu0 0.0
    %1537 = vmatpush1.msra.mxu0 %v1438
    %1538 = vmatprep.subr.mxu0 0.0
    %1539 = vmatpush1.msra.mxu0 %v1437
    %1540 = vmatprep.subr.mxu0 0.0
    %1541 = vmatpush2.msra.mxu0 %v1468
    %1542 = vmatprep.subr.mxu0 0.0
    %1543 = vmatpush2.msra.mxu0 %v1467
    %1544 = vmatprep.subr.mxu0 0.0
    %1545 = vmatpush2.msra.mxu0 %v1466
    %1546 = vmatprep.subr.mxu0 0.0
    %1547 = vmatpush2.msra.mxu0 %v1465
    %1548 = vmatprep.subr.mxu0 0.0
    %1549 = vmatpush2.msra.mxu0 %v1464
    %1550 = vmatprep.subr.mxu0 0.0
    %1551 = vmatpush2.msra.mxu0 %v1463
    %1552 = vmatprep.subr.mxu0 0.0
    %1553 = vmatpush2.msra.mxu0 %v1462
    %1554 = vmatprep.subr.mxu0 0.0
    %1555 = vmatpush2.msra.mxu0 %v1461
    %1556 = vmatprep.subr.mxu0 0.0
    %1557 = vmatpush2.msra.mxu0 %v1460
    %1558 = vmatprep.subr.mxu0 0.0
    %1559 = vmatpush2.msra.mxu0 %v1459
    %1560 = vmatprep.subr.mxu0 0.0
    %1561 = vmatpush2.msra.mxu0 %v1458
    %1562 = vmatprep.subr.mxu0 0.0
    %1563 = vmatpush2.msra.mxu0 %v1457
    %1564 = vmatprep.subr.mxu0 0.0
    %1565 = vmatpush2.msra.mxu0 %v1456
    %1566 = vmatprep.subr.mxu0 0.0
    %1567 = vmatpush2.msra.mxu0 %v1455
    %1568 = vmatprep.subr.mxu0 0.0
    %1569 = vmatpush2.msra.mxu0 %v1454
    %1570 = vmatprep.subr.mxu0 0.0
    %1571 = vmatpush2.msra.mxu0 %v1453
    %1572 = vmatprep.mubr.f32.mxu0 %v1434
    %1573 = vmatmul.mubr.f32.gmra.mxu0 %v1433
    %v1574 = vpop.f32.mrf.mxu0
    %v1575 = vadd.f32 %v1506, %v1574
    %v1576 = vpop.f32.mrf.mxu0
    %1577 = vdwg.mxu0
    %1578 = vmatprep.subr.mxu0 0.0
    %1579 = vmatpush1.msra.mxu0 %v1484
    %1580 = vmatprep.subr.mxu0 0.0
    %1581 = vmatpush1.msra.mxu0 %v1483
    %1582 = vmatprep.subr.mxu0 0.0
    %1583 = vmatpush1.msra.mxu0 %v1482
    %1584 = vmatprep.subr.mxu0 0.0
    %1585 = vmatpush1.msra.mxu0 %v1481
    %1586 = vmatprep.subr.mxu0 0.0
    %1587 = vmatpush1.msra.mxu0 %v1480
    %1588 = vmatprep.subr.mxu0 0.0
    %1589 = vmatpush1.msra.mxu0 %v1479
    %1590 = vmatprep.subr.mxu0 0.0
    %1591 = vmatpush1.msra.mxu0 %v1478
    %1592 = vmatprep.subr.mxu0 0.0
    %1593 = vmatpush1.msra.mxu0 %v1477
    %1594 = vmatprep.subr.mxu0 0.0
    %1595 = vmatpush1.msra.mxu0 %v1476
    %1596 = vmatprep.subr.mxu0 0.0
    %1597 = vmatpush1.msra.mxu0 %v1475
    %1598 = vmatprep.subr.mxu0 0.0
    %1599 = vmatpush1.msra.mxu0 %v1474
    %1600 = vmatprep.subr.mxu0 0.0
    %1601 = vmatpush1.msra.mxu0 %v1473
    %1602 = vmatprep.subr.mxu0 0.0
    %1603 = vmatpush1.msra.mxu0 %v1472
    %1604 = vmatprep.subr.mxu0 0.0
    %1605 = vmatpush1.msra.mxu0 %v1471
    %1606 = vmatprep.subr.mxu0 0.0
    %1607 = vmatpush1.msra.mxu0 %v1470
    %1608 = vmatprep.subr.mxu0 0.0
    %1609 = vmatpush1.msra.mxu0 %v1469
    %1610 = vmatprep.subr.mxu0 0.0
    %1611 = vmatpush2.msra.mxu0 %v1500
    %1612 = vmatprep.subr.mxu0 0.0
    %1613 = vmatpush2.msra.mxu0 %v1499
    %1614 = vmatprep.subr.mxu0 0.0
    %1615 = vmatpush2.msra.mxu0 %v1498
    %1616 = vmatprep.subr.mxu0 0.0
    %1617 = vmatpush2.msra.mxu0 %v1497
    %1618 = vmatprep.subr.mxu0 0.0
    %1619 = vmatpush2.msra.mxu0 %v1496
    %1620 = vmatprep.subr.mxu0 0.0
    %1621 = vmatpush2.msra.mxu0 %v1495
    %1622 = vmatprep.subr.mxu0 0.0
    %1623 = vmatpush2.msra.mxu0 %v1494
    %1624 = vmatprep.subr.mxu0 0.0
    %1625 = vmatpush2.msra.mxu0 %v1493
    %1626 = vmatprep.subr.mxu0 0.0
    %1627 = vmatpush2.msra.mxu0 %v1492
    %1628 = vmatprep.subr.mxu0 0.0
    %1629 = vmatpush2.msra.mxu0 %v1491
    %1630 = vmatprep.subr.mxu0 0.0
    %1631 = vmatpush2.msra.mxu0 %v1490
    %1632 = vmatprep.subr.mxu0 0.0
    %1633 = vmatpush2.msra.mxu0 %v1489
    %1634 = vmatprep.subr.mxu0 0.0
    %1635 = vmatpush2.msra.mxu0 %v1488
    %1636 = vmatprep.subr.mxu0 0.0
    %1637 = vmatpush2.msra.mxu0 %v1487
    %1638 = vmatprep.subr.mxu0 0.0
    %1639 = vmatpush2.msra.mxu0 %v1486
    %1640 = vmatprep.subr.mxu0 0.0
    %1641 = vmatpush2.msra.mxu0 %v1485
    %1642 = vmatprep.mubr.f32.mxu0 %v1436
    %1643 = vmatmul.mubr.f32.gmra.mxu0 %v1435
    %v1644 = vpop.f32.mrf.mxu0
    %v1645 = vadd.f32 %v1575, %v1644
    %v1646 = vpop.f32.mrf.mxu0
    %1647 = vdwg.mxu0
    %1648 = vst [vmem:[#allocation13] sm:$0xff] %v1645
    // Predicated region
    $region62: #{tpu_custom_call.1} parent=1 // pred_check
      _
    $region63: #{tpu_custom_call.1} parent=1 // pred_check_branch
      %1650 = sbr.rel (0) target = $region65
    $region64: #{tpu_custom_call.1} parent=1 // pred_region
      %s1652 = ssub.s32 128, 128
      %1653 = vsyncadd [#allocation4], %s1652
      %s1655 = sshll.u32 [#allocation13], 4
      %s1656 = int_to_ptr.vmem [resolvable:$true] %s1655
      %1658 = dma.vmem_to_hbm [thread:$0]  %s1656, 128, %s9, [#allocation4]
    $region65: #{tpu_custom_call.1} parent=1 // pred_fallthru
      _
    // Predicated region
    $region66: #{tpu_custom_call.1} parent=1 // pred_check
      _
    $region67: #{tpu_custom_call.1} parent=1 // pred_check_branch
      %1660 = sbr.rel (0) target = $region69
    $region68: #{tpu_custom_call.1} parent=1 // pred_region
      %1661 = dma.done [#allocation4], 128
    $region69: #{tpu_custom_call.1} parent=1 // pred_fallthru
      _
    %1662 = vsyncpa [#allocation3], 1
    %1663 = vsyncpa [#allocation6], 1
    %1664 = vsyncpa [#allocation9], 1
    %1665 = vsyncpa [#allocation12], 1
    %1666 = vsyncpa [#allocation4], 1

</llo_original>
